<compile_context>
chip_gen: v6e
topology: v6e:2x2x1
jax: 0.10.0
libtpu: 0.0.40
codegen_flags: <defaults>
</compile_context>

<pallas_src>
import functools
import math

import jax
import jax.numpy as jnp
from jax import lax
from jax.experimental import pallas as pl
from jax.experimental.pallas import tpu as pltpu


# ---------------------------------------------------------------------------
# Shared helpers
# ---------------------------------------------------------------------------
def _round_up(x, m):
    return ((x + m - 1) // m) * m


def _vmem_capacity_bytes():
    """Physical VMEM per TensorCore; conservative v7x default if unknown."""
    get_info = getattr(pltpu, "get_tpu_info", None)
    if get_info is not None:
        try:
            cap = int(getattr(get_info(), "vmem_capacity_bytes", 0) or 0)
            if cap > 0:
                return cap
        except Exception:
            pass
    return 64 * 1024 * 1024


def _unpack_vecs(vecs):
    """(8, Dp) f32 pack -> b_all, b_fus, b_o, b_f2, bn1s, bn1b, bn2s, bn2b."""
    return (vecs[0:1], vecs[1:2], vecs[2:3], vecs[3:4],
            vecs[4:5], vecs[5:6], vecs[6:7], vecs[7:8])


def _block_tail(comb, x, cdt, w_fus, b_fus, w_o, b_o, w_f1, b_f1, w_f2, b_f2,
                bn1s, bn1b, bn2s, bn2b):
    """fusion + O_h + residual + BN1 + FFN + residual + BN2 (eval mode)."""
    f32 = jnp.float32
    attn = jnp.maximum(
        jnp.dot(comb.astype(cdt), w_fus, preferred_element_type=f32) + b_fus,
        0.0)                                                   # fusion+relu
    h = jnp.dot(attn.astype(cdt), w_o, preferred_element_type=f32) + b_o
    h = x + h                                                  # residual 1
    h = h * bn1s + bn1b                                        # batch_norm1_h
    h2 = h
    h = jnp.maximum(
        jnp.dot(h.astype(cdt), w_f1, preferred_element_type=f32) + b_f1, 0.0)
    h = jnp.dot(h.astype(cdt), w_f2, preferred_element_type=f32) + b_f2
    h = h2 + h                                                 # residual 2
    return h * bn2s + bn2b                                     # batch_norm2_h


# ---------------------------------------------------------------------------
# FUSED kernel: U resident in VMEM, whole layer in one pass (no grid).
# ---------------------------------------------------------------------------
def _fused_kernel(x_ref, s_ref, u_ref, w_all_ref, w_fus_ref, w_o_ref,
                  w_f1_ref, b_f1_ref, w_f2_ref, vecs_ref, out_ref):
    f32 = jnp.float32
    cdt = u_ref.dtype

    (b_all, b_fus, b_o, b_f2,
     bn1s, bn1b, bn2s, bn2b) = _unpack_vecs(vecs_ref[...])

    u = u_ref[...]
    x = x_ref[...]
    s = s_ref[...]

    # Padded x rows give h0 = b_all (nonzero) but padded rows/cols of U are
    # zero, so they never reach the output; padded rows are sliced off later.
    h0 = jnp.dot(x.astype(cdt), w_all_ref[...],
                 preferred_element_type=f32) + b_all
    # U^T @ h0 without materializing U^T (contract axis 0 of U).
    b = s * lax.dot_general(u, h0.astype(cdt), (((0,), (0,)), ((), ())),
                            preferred_element_type=f32)
    c = jnp.maximum(jnp.dot(u, b.astype(cdt), preferred_element_type=f32), 0.0)
    e = s * lax.dot_general(u, c.astype(cdt), (((0,), (0,)), ((), ())),
                            preferred_element_type=f32)
    comb = jnp.dot(u, e.astype(cdt), preferred_element_type=f32)

    out_ref[...] = _block_tail(
        comb, x, cdt, w_fus_ref[...], b_fus, w_o_ref[...], b_o,
        w_f1_ref[...], b_f1_ref[...], w_f2_ref[...], b_f2,
        bn1s, bn1b, bn2s, bn2b)


# ---------------------------------------------------------------------------
# TILED fallback kernels (U streamed by row tiles; for U too big for VMEM).
# ---------------------------------------------------------------------------
def _stage1_kernel(x_ref, u_ref, w_ref, vecs_ref, out_ref):
    """out (resident f32 acc) = U^T @ (x @ W_all + b_all)   (no S scaling)."""
    k = pl.program_id(0)
    f32 = jnp.float32
    cdt = u_ref.dtype

    @pl.when(k == 0)
    def _():
        out_ref[...] = jnp.zeros_like(out_ref)

    b_all = vecs_ref[0:1, :]
    h0 = jnp.dot(x_ref[...].astype(cdt), w_ref[...],
                 preferred_element_type=f32) + b_all
    out_ref[...] += lax.dot_general(u_ref[...], h0.astype(cdt),
                                    (((0,), (0,)), ((), ())),
                                    preferred_element_type=f32)


def _stage2_kernel(u_ref, b_ref, out_ref):
    """out (resident f32 acc) = U^T @ relu(U @ b);  b is pre-scaled, in cdt."""
    k = pl.program_id(0)
    f32 = jnp.float32

    @pl.when(k == 0)
    def _():
        out_ref[...] = jnp.zeros_like(out_ref)

    u = u_ref[...]
    c = jnp.maximum(jnp.dot(u, b_ref[...], preferred_element_type=f32), 0.0)
    out_ref[...] += lax.dot_general(u, c.astype(u.dtype),
                                    (((0,), (0,)), ((), ())),
                                    preferred_element_type=f32)


def _stage3_kernel(u_ref, e_ref, x_ref, w_fus_ref, w_o_ref, w_f1_ref,
                   b_f1_ref, w_f2_ref, vecs_ref, out_ref):
    """out tile = block_tail(U_k @ e, x_k);  e is pre-scaled, in cdt."""
    f32 = jnp.float32
    cdt = u_ref.dtype

    (_, b_fus, b_o, b_f2,
     bn1s, bn1b, bn2s, bn2b) = _unpack_vecs(vecs_ref[...])

    comb = jnp.dot(u_ref[...], e_ref[...], preferred_element_type=f32)
    out_ref[...] = _block_tail(
        comb, x_ref[...], cdt, w_fus_ref[...], b_fus, w_o_ref[...], b_o,
        w_f1_ref[...], b_f1_ref[...], w_f2_ref[...], b_f2,
        bn1s, bn1b, bn2s, bn2b)


# ---------------------------------------------------------------------------
# Wrapper: padding, path selection, pallas_calls.
# ---------------------------------------------------------------------------
@functools.partial(jax.jit,
                   static_argnames=("tile_n", "compute_dtype", "force_path"))
def wave_san_forward(x, evc, sig_mat, w_all, b_all, w_fus, b_fus, w_o, b_o,
                     w_f1, b_f1, w_f2, b_f2, bn1_scale, bn1_shift,
                     bn2_scale, bn2_shift, *, tile_n=None,
                     compute_dtype=jnp.bfloat16, force_path=None):
    n, d = x.shape
    d2 = w_f1.shape[1]
    f32 = jnp.float32

    # Lane-dense channel axes.
    dp = _round_up(d, 128)
    d2p = _round_up(d2, 128)

    cbytes = jnp.dtype(compute_dtype).itemsize
    cap = _vmem_capacity_bytes()
    vmem_limit = min(int(cap * 0.80), 112 * 1024 * 1024)

    if tile_n is None:
        tile_n = 512 if cap >= 96 * 1024 * 1024 else 256
    assert tile_n % 16 == 0, "tile_n must be a multiple of 16"

    weights_bytes = (3 * dp * dp + 2 * dp * d2p) * cbytes

    # Fused-path VMEM estimate: resident U + x/S/out + intermediate slabs.
    np_fused = _round_up(n, 128)
    fused_need = (np_fused * np_fused * cbytes
                  + 12 * np_fused * max(dp, d2p) * 4
                  + weights_bytes)
    if force_path == "fused":
        use_fused = True
    elif force_path == "tiled":
        use_fused = False
    else:
        use_fused = fused_need <= int(0.85 * vmem_limit)

    if use_fused:
        np_ = np_fused
    else:
        g = math.gcd(tile_n, 128)
        np_ = _round_up(max(n, tile_n), tile_n * 128 // g)

    # -- zero padding (exact: padded U rows/cols, weight rows/cols and biases
    #    are zero; padded output rows/cols are sliced off at the end) --------
    def pad_mat(a, rows, cols, dtype):
        a = a.astype(f32)
        return jnp.pad(a, ((0, rows - a.shape[0]),
                           (0, cols - a.shape[1]))).astype(dtype)

    def pad_row(v, cols):  # -> (1, cols) f32
        v = v.astype(f32)
        return jnp.pad(v, (0, cols - v.shape[0])).reshape(1, cols)

    x_f = pad_mat(x, np_, dp, f32)
    s_f = pad_mat(sig_mat, np_, dp, f32)
    u_c = pad_mat(evc, np_, np_, compute_dtype)
    w_all_c = pad_mat(w_all, dp, dp, compute_dtype)
    w_fus_c = pad_mat(w_fus, dp, dp, compute_dtype)
    w_o_c = pad_mat(w_o, dp, dp, compute_dtype)
    w_f1_c = pad_mat(w_f1, dp, d2p, compute_dtype)
    w_f2_c = pad_mat(w_f2, d2p, dp, compute_dtype)
    b_f1_row = pad_row(b_f1, d2p)
    # Pack the eight dim_h-wide vectors into a single (8, Dp) f32 operand.
    vec_pack = jnp.concatenate(
        [pad_row(v, dp) for v in (b_all, b_fus, b_o, b_f2,
                                  bn1_scale, bn1_shift, bn2_scale, bn2_shift)],
        axis=0)

    bytes_u = np_ * np_ * cbytes
    flops_spec = 8 * np_ * np_ * dp                       # 4 spectral matmuls
    flops_mlp = 2 * np_ * dp * (3 * dp + 2 * d2p)         # fusion/O_h/FFN

    if use_fused:
        out = pl.pallas_call(
            _fused_kernel,
            out_shape=jax.ShapeDtypeStruct((np_, dp), f32),
            compiler_params=pltpu.CompilerParams(vmem_limit_bytes=vmem_limit),
            cost_estimate=pl.CostEstimate(
                flops=int(flops_spec + flops_mlp + 2 * np_ * dp * dp),
                transcendentals=0,
                bytes_accessed=int(bytes_u + 4 * np_ * dp * 4 + weights_bytes)),
        )(x_f, s_f, u_c, w_all_c, w_fus_c, w_o_c, w_f1_c, b_f1_row, w_f2_c,
          vec_pack)
        return out[:n, :d]

    # ---------------------- tiled fallback (large N) ------------------------
    kt = np_ // tile_n
    tile_row = lambda cols: pl.BlockSpec((tile_n, cols), lambda k: (k, 0))
    full = lambda r, c: pl.BlockSpec((r, c), lambda k: (0, 0))
    cp_red = pltpu.CompilerParams(dimension_semantics=("arbitrary",),
                                  vmem_limit_bytes=vmem_limit)
    cp_par = pltpu.CompilerParams(dimension_semantics=("parallel",),
                                  vmem_limit_bytes=vmem_limit)

    # stage 1: b_raw = U^T @ (x @ W_all + b_all)
    b_raw = pl.pallas_call(
        _stage1_kernel,
        out_shape=jax.ShapeDtypeStruct((np_, dp), f32),
        grid=(kt,),
        in_specs=[tile_row(dp), tile_row(np_), full(dp, dp), full(8, dp)],
        out_specs=full(np_, dp),
        compiler_params=cp_red,
        cost_estimate=pl.CostEstimate(
            flops=int(2 * np_ * dp * dp + 2 * np_ * np_ * dp),
            transcendentals=0,
            bytes_accessed=int(bytes_u + 2 * np_ * dp * 4)),
    )(x_f, u_c, w_all_c, vec_pack)

    # S-scale + cast once (tiny XLA op), so stage 2 gets a resident cdt block.
    b_c = (b_raw * s_f).astype(compute_dtype)

    # stage 2: e_raw = U^T @ relu(U @ b)
    e_raw = pl.pallas_call(
        _stage2_kernel,
        out_shape=jax.ShapeDtypeStruct((np_, dp), f32),
        grid=(kt,),
        in_specs=[tile_row(np_), full(np_, dp)],
        out_specs=full(np_, dp),
        compiler_params=cp_red,
        cost_estimate=pl.CostEstimate(
            flops=int(4 * np_ * np_ * dp),
            transcendentals=0,
            bytes_accessed=int(bytes_u + np_ * dp * (cbytes + 4))),
    )(u_c, b_c)

    e_c = (e_raw * s_f).astype(compute_dtype)

    # stage 3: out = block_tail(U @ e, x)
    out = pl.pallas_call(
        _stage3_kernel,
        out_shape=jax.ShapeDtypeStruct((np_, dp), f32),
        grid=(kt,),
        in_specs=[tile_row(np_), full(np_, dp), tile_row(dp),
                  full(dp, dp), full(dp, dp), full(dp, d2p), full(1, d2p),
                  full(d2p, dp), full(8, dp)],
        out_specs=tile_row(dp),
        compiler_params=cp_par,
        cost_estimate=pl.CostEstimate(
            flops=int(2 * np_ * np_ * dp + flops_mlp),
            transcendentals=0,
            bytes_accessed=int(bytes_u + np_ * dp * (cbytes + 8)
                               + weights_bytes)),
    )(u_c, e_c, x_f, w_fus_c, w_o_c, w_f1_c, b_f1_row, w_f2_c, vec_pack)

    return out[:n, :d]


# ---------------------------------------------------------------------------
# Pure-JAX reference mirroring the PyTorch forward (per-filter loop, f32).
# ---------------------------------------------------------------------------
def reference_forward(x, evc, sig, lin_w, lin_b, wfus, bfus, wo, bo,
                      wf1, bf1, wf2, bf2, bn1s, bn1b, bn2s, bn2b):
    comb = []
    for t in range(len(lin_w)):
        h = x @ lin_w[t] + lin_b[t]
        h = evc.T @ h
        h = sig[:, t:t + 1] * h
        h = jnp.maximum(evc @ h, 0.0)
        h = evc.T @ h
        h = sig[:, t:t + 1] * h
        h = evc @ h
        comb.append(h)
    comb = jnp.concatenate(comb, axis=-1)
    attn = jnp.maximum(comb @ wfus + bfus, 0.0)

    h = attn @ wo + bo
    h = x + h
    h = h * bn1s + bn1b
    h2 = h
    h = jnp.maximum(h @ wf1 + bf1, 0.0)
    h = h @ wf2 + bf2
    h = h2 + h
    h = h * bn2s + bn2b
    return h


# ---------------------------------------------------------------------------
# Deterministic synthetic parameters / inputs.
# ---------------------------------------------------------------------------
if __name__ == "__main__":
    N = 48        # number of graph nodes
    DIM_H = 32    # hidden dim
    NUM_J = 2     # -> t_number = 3, single_out = 10, single_out_last = 12
    T = NUM_J + 1
    single_out = DIM_H // T
    single_out_last = DIM_H - NUM_J * single_out
    sizes = [single_out] * NUM_J + [single_out_last]

    key = jax.random.PRNGKey(0)
    ks = iter(jax.random.split(key, 32))

    def rnd(shape, scale=0.1):
        return (scale * jax.random.normal(next(ks), shape)).astype(jnp.float32)

    # graph data (batch.x, batch.eigenvector, batch.filter_signals_after)
    x = rnd((N, DIM_H), 1.0)
    evc = rnd((N, N), 0.25)
    filter_signals_after = rnd((1, N, T), 1.0)       # [1, N, T] as in PyTorch
    sig = filter_signals_after[0]                    # [N, T]

    # Wave_Conv params
    lin_w = [rnd((DIM_H, sz)) for sz in sizes]
    lin_b = [rnd((sz,)) for sz in sizes]
    w_fus, b_fus = rnd((DIM_H, DIM_H)), rnd((DIM_H,))
    # WaveSAN_large params
    w_o, b_o = rnd((DIM_H, DIM_H)), rnd((DIM_H,))
    w_f1, b_f1 = rnd((DIM_H, 2 * DIM_H)), rnd((2 * DIM_H,))
    w_f2, b_f2 = rnd((2 * DIM_H, DIM_H)), rnd((DIM_H,))

    # BatchNorm1d (eval mode) -> folded scale/shift
    eps = 1e-5
    def bn_fold():
        gamma = rnd((DIM_H,), 0.5) + 1.0
        beta = rnd((DIM_H,), 0.5)
        r_mean = rnd((DIM_H,), 0.2)
        r_var = jnp.abs(rnd((DIM_H,), 0.2)) + 1.0
        scale = gamma / jnp.sqrt(r_var + eps)
        shift = beta - r_mean * scale
        return scale, shift

    bn1_scale, bn1_shift = bn_fold()
    bn2_scale, bn2_shift = bn_fold()

    # Glue: fuse per-filter linears and expand filter signals over channels.
    w_all = jnp.concatenate(lin_w, axis=1)                       # [D, D]
    b_all = jnp.concatenate(lin_b, axis=0)                       # [D]
    s_mat = jnp.concatenate(
        [jnp.broadcast_to(sig[:, t:t + 1], (N, sz))
         for t, sz in enumerate(sizes)], axis=1)                 # [N, D]

    args = (x, evc, s_mat, w_all, b_all, w_fus, b_fus, w_o, b_o,
            w_f1, b_f1, w_f2, b_f2, bn1_scale, bn1_shift, bn2_scale, bn2_shift)

    ref = reference_forward(
        x, evc, sig, lin_w, lin_b, w_fus, b_fus, w_o, b_o,
        w_f1, b_f1, w_f2, b_f2, bn1_scale, bn1_shift, bn2_scale, bn2_shift)

    # Fused path, f32 operands -> exactness check of the pipeline itself.
    out_fused_f32 = jax.block_until_ready(
        wave_san_forward(*args, compute_dtype=jnp.float32, force_path="fused"))
    assert out_fused_f32.shape == (N, DIM_H)
    assert jnp.allclose(out_fused_f32, ref, atol=1e-3, rtol=1e-3), \
        "fused f32 kernel mismatch"

    # Tiled fallback path, f32 operands, multi-step grid (kt = 2).
    out_tiled_f32 = jax.block_until_ready(
        wave_san_forward(*args, tile_n=64, compute_dtype=jnp.float32,
                         force_path="tiled"))
    assert out_tiled_f32.shape == (N, DIM_H)
    assert jnp.allclose(out_tiled_f32, ref, atol=1e-3, rtol=1e-3), \
        "tiled f32 kernel mismatch"

    # Optimized bf16-operand / f32-accumulation path (auto -> fused here).
    out_bf16 = jax.block_until_ready(wave_san_forward(*args))
    assert out_bf16.shape == (N, DIM_H)
    rel = float(jnp.linalg.norm(out_bf16 - ref) / jnp.linalg.norm(ref))
    assert rel < 5e-2, f"bf16 kernel relative error too large: {rel}"

    # TODO(synk): the 'trans' branch (torch.nn.MultiheadAttention) of
    # WaveSAN_large is only taken for the first/last layer when
    # cfg.WaveGC.trans_use; this kernel implements the wavelet (Wave_Conv)
    # attention path.
    print("KERNEL_OK")
</pallas_src>

<mosaic_0001>
module attributes {stable_mosaic.version = 11 : i64} {
  func.func @_fused_kernel(%arg0: memref<128x128xf32, #tpu.memory_space<vmem>>, %arg1: memref<128x128xf32, #tpu.memory_space<vmem>>, %arg2: memref<128x128xf32, #tpu.memory_space<vmem>>, %arg3: memref<128x128xf32, #tpu.memory_space<vmem>>, %arg4: memref<128x128xf32, #tpu.memory_space<vmem>>, %arg5: memref<128x128xf32, #tpu.memory_space<vmem>>, %arg6: memref<128x128xf32, #tpu.memory_space<vmem>>, %arg7: memref<1x128xf32, #tpu.memory_space<vmem>>, %arg8: memref<128x128xf32, #tpu.memory_space<vmem>>, %arg9: memref<8x128xf32, #tpu.memory_space<vmem>>, %arg10: memref<128x128xf32, #tpu.memory_space<vmem>>) attributes {dimension_semantics = [], scalar_prefetch = 0 : i64, scratch_operands = 0 : i64, tpu.core_type = #tpu.core_type<tc>} {
    %c0 = arith.constant 0 : index
    %c0_0 = arith.constant 0 : index
    %0 = vector.load %arg9[%c0, %c0_0] : memref<8x128xf32, #tpu.memory_space<vmem>>, vector<8x128xf32>
    %1 = vector.extract_strided_slice %0 {offsets = [0, 0], sizes = [1, 128], strides = [1, 1]} : vector<8x128xf32> to vector<1x128xf32>
    %2 = vector.extract_strided_slice %0 {offsets = [1, 0], sizes = [1, 128], strides = [1, 1]} : vector<8x128xf32> to vector<1x128xf32>
    %3 = vector.extract_strided_slice %0 {offsets = [2, 0], sizes = [1, 128], strides = [1, 1]} : vector<8x128xf32> to vector<1x128xf32>
    %4 = vector.extract_strided_slice %0 {offsets = [3, 0], sizes = [1, 128], strides = [1, 1]} : vector<8x128xf32> to vector<1x128xf32>
    %5 = vector.extract_strided_slice %0 {offsets = [4, 0], sizes = [1, 128], strides = [1, 1]} : vector<8x128xf32> to vector<1x128xf32>
    %6 = vector.extract_strided_slice %0 {offsets = [5, 0], sizes = [1, 128], strides = [1, 1]} : vector<8x128xf32> to vector<1x128xf32>
    %7 = vector.extract_strided_slice %0 {offsets = [6, 0], sizes = [1, 128], strides = [1, 1]} : vector<8x128xf32> to vector<1x128xf32>
    %8 = vector.extract_strided_slice %0 {offsets = [7, 0], sizes = [1, 128], strides = [1, 1]} : vector<8x128xf32> to vector<1x128xf32>
    %c0_1 = arith.constant 0 : index
    %c0_2 = arith.constant 0 : index
    %9 = vector.load %arg2[%c0_1, %c0_2] : memref<128x128xf32, #tpu.memory_space<vmem>>, vector<128x128xf32>
    %c0_3 = arith.constant 0 : index
    %c0_4 = arith.constant 0 : index
    %10 = vector.load %arg0[%c0_3, %c0_4] : memref<128x128xf32, #tpu.memory_space<vmem>>, vector<128x128xf32>
    %c0_5 = arith.constant 0 : index
    %c0_6 = arith.constant 0 : index
    %11 = vector.load %arg1[%c0_5, %c0_6] : memref<128x128xf32, #tpu.memory_space<vmem>>, vector<128x128xf32>
    %c0_7 = arith.constant 0 : index
    %c0_8 = arith.constant 0 : index
    %12 = vector.load %arg3[%c0_7, %c0_8] : memref<128x128xf32, #tpu.memory_space<vmem>>, vector<128x128xf32>
    %cst = arith.constant dense<0.000000e+00> : vector<128x128xf32>
    %13 = tpu.matmul %10, %12, %cst {dimension_numbers = #tpu.dot_dimension_numbers<[1], [0], [0], [1], [0, 0, 1, 1], [], []>} : vector<128x128xf32>, vector<128x128xf32>, vector<128x128xf32> -> vector<128x128xf32>
    %14 = vector.broadcast %1 : vector<1x128xf32> to vector<128x128xf32>
    %15 = arith.addf %13, %14 : vector<128x128xf32>
    %cst_9 = arith.constant dense<0.000000e+00> : vector<128x128xf32>
    %16 = tpu.matmul %9, %15, %cst_9 {dimension_numbers = #tpu.dot_dimension_numbers<[0], [0], [1], [1], [0, 1, 1, 1], [], []>} : vector<128x128xf32>, vector<128x128xf32>, vector<128x128xf32> -> vector<128x128xf32>
    %17 = arith.mulf %11, %16 : vector<128x128xf32>
    %cst_10 = arith.constant dense<0.000000e+00> : vector<128x128xf32>
    %18 = tpu.matmul %9, %17, %cst_10 {dimension_numbers = #tpu.dot_dimension_numbers<[1], [0], [0], [1], [0, 0, 1, 1], [], []>} : vector<128x128xf32>, vector<128x128xf32>, vector<128x128xf32> -> vector<128x128xf32>
    %cst_11 = arith.constant 0.000000e+00 : f32
    %19 = vector.broadcast %cst_11 : f32 to vector<128x128xf32>
    %20 = arith.maximumf %18, %19 : vector<128x128xf32>
    %cst_12 = arith.constant dense<0.000000e+00> : vector<128x128xf32>
    %21 = tpu.matmul %9, %20, %cst_12 {dimension_numbers = #tpu.dot_dimension_numbers<[0], [0], [1], [1], [0, 1, 1, 1], [], []>} : vector<128x128xf32>, vector<128x128xf32>, vector<128x128xf32> -> vector<128x128xf32>
    %22 = arith.mulf %11, %21 : vector<128x128xf32>
    %cst_13 = arith.constant dense<0.000000e+00> : vector<128x128xf32>
    %23 = tpu.matmul %9, %22, %cst_13 {dimension_numbers = #tpu.dot_dimension_numbers<[1], [0], [0], [1], [0, 0, 1, 1], [], []>} : vector<128x128xf32>, vector<128x128xf32>, vector<128x128xf32> -> vector<128x128xf32>
    %c0_14 = arith.constant 0 : index
    %c0_15 = arith.constant 0 : index
    %24 = vector.load %arg4[%c0_14, %c0_15] : memref<128x128xf32, #tpu.memory_space<vmem>>, vector<128x128xf32>
    %c0_16 = arith.constant 0 : index
    %c0_17 = arith.constant 0 : index
    %25 = vector.load %arg5[%c0_16, %c0_17] : memref<128x128xf32, #tpu.memory_space<vmem>>, vector<128x128xf32>
    %c0_18 = arith.constant 0 : index
    %c0_19 = arith.constant 0 : index
    %26 = vector.load %arg6[%c0_18, %c0_19] : memref<128x128xf32, #tpu.memory_space<vmem>>, vector<128x128xf32>
    %c0_20 = arith.constant 0 : index
    %c0_21 = arith.constant 0 : index
    %27 = vector.load %arg7[%c0_20, %c0_21] : memref<1x128xf32, #tpu.memory_space<vmem>>, vector<1x128xf32>
    %c0_22 = arith.constant 0 : index
    %c0_23 = arith.constant 0 : index
    %28 = vector.load %arg8[%c0_22, %c0_23] : memref<128x128xf32, #tpu.memory_space<vmem>>, vector<128x128xf32>
    %cst_24 = arith.constant dense<0.000000e+00> : vector<128x128xf32>
    %29 = tpu.matmul %23, %24, %cst_24 {dimension_numbers = #tpu.dot_dimension_numbers<[1], [0], [0], [1], [0, 0, 1, 1], [], []>} : vector<128x128xf32>, vector<128x128xf32>, vector<128x128xf32> -> vector<128x128xf32>
    %30 = vector.broadcast %2 : vector<1x128xf32> to vector<128x128xf32>
    %31 = arith.addf %29, %30 : vector<128x128xf32>
    %cst_25 = arith.constant 0.000000e+00 : f32
    %32 = vector.broadcast %cst_25 : f32 to vector<128x128xf32>
    %33 = arith.maximumf %31, %32 : vector<128x128xf32>
    %cst_26 = arith.constant dense<0.000000e+00> : vector<128x128xf32>
    %34 = tpu.matmul %33, %25, %cst_26 {dimension_numbers = #tpu.dot_dimension_numbers<[1], [0], [0], [1], [0, 0, 1, 1], [], []>} : vector<128x128xf32>, vector<128x128xf32>, vector<128x128xf32> -> vector<128x128xf32>
    %35 = vector.broadcast %3 : vector<1x128xf32> to vector<128x128xf32>
    %36 = arith.addf %34, %35 : vector<128x128xf32>
    %37 = arith.addf %10, %36 : vector<128x128xf32>
    %38 = vector.broadcast %5 : vector<1x128xf32> to vector<128x128xf32>
    %39 = arith.mulf %37, %38 : vector<128x128xf32>
    %40 = vector.broadcast %6 : vector<1x128xf32> to vector<128x128xf32>
    %41 = arith.addf %39, %40 : vector<128x128xf32>
    %cst_27 = arith.constant dense<0.000000e+00> : vector<128x128xf32>
    %42 = tpu.matmul %41, %26, %cst_27 {dimension_numbers = #tpu.dot_dimension_numbers<[1], [0], [0], [1], [0, 0, 1, 1], [], []>} : vector<128x128xf32>, vector<128x128xf32>, vector<128x128xf32> -> vector<128x128xf32>
    %43 = vector.broadcast %27 : vector<1x128xf32> to vector<128x128xf32>
    %44 = arith.addf %42, %43 : vector<128x128xf32>
    %cst_28 = arith.constant 0.000000e+00 : f32
    %45 = vector.broadcast %cst_28 : f32 to vector<128x128xf32>
    %46 = arith.maximumf %44, %45 : vector<128x128xf32>
    %cst_29 = arith.constant dense<0.000000e+00> : vector<128x128xf32>
    %47 = tpu.matmul %46, %28, %cst_29 {dimension_numbers = #tpu.dot_dimension_numbers<[1], [0], [0], [1], [0, 0, 1, 1], [], []>} : vector<128x128xf32>, vector<128x128xf32>, vector<128x128xf32> -> vector<128x128xf32>
    %48 = vector.broadcast %4 : vector<1x128xf32> to vector<128x128xf32>
    %49 = arith.addf %47, %48 : vector<128x128xf32>
    %50 = arith.addf %41, %49 : vector<128x128xf32>
    %51 = vector.broadcast %7 : vector<1x128xf32> to vector<128x128xf32>
    %52 = arith.mulf %50, %51 : vector<128x128xf32>
    %53 = vector.broadcast %8 : vector<1x128xf32> to vector<128x128xf32>
    %54 = arith.addf %52, %53 : vector<128x128xf32>
    %c0_30 = arith.constant 0 : index
    %c0_31 = arith.constant 0 : index
    %55 = vector.load %arg10[%c0_30, %c0_31] : memref<128x128xf32, #tpu.memory_space<vmem>>, vector<128x128xf32>
    tpu.vector_store %arg10[%c0_30, %c0_31], %54 {strides = array<i32>} : memref<128x128xf32, #tpu.memory_space<vmem>>, vector<128x128xf32>,
    return
  }
}

</mosaic_0001>

<llo_original>
// kernel: wave_san_forward.1
$region0: #{wave_san_forward.1}
  #allocation0 [shape = 'u32[]', space=smem, size = 0x4, offset = 0x4, fixed_abs, tag = 'smem constant byte address 0x4 - core index']
  #allocation1 [shape = 'u32[144,128]{1,0:T(1,128)}', space=vmem, size = 0x12000, scoped, tag = 'internal scratch']
  %s0 = inlined_call_operand.vmem [shape: f32[128,128], index: 0, kind: input, shape index: {}]
  %s1 = inlined_call_operand.vmem [shape: f32[128,128], index: 1, kind: input, shape index: {}]
  %s2 = inlined_call_operand.vmem [shape: f32[128,128], index: 2, kind: input, shape index: {}]
  %s3 = inlined_call_operand.vmem [shape: f32[128,128], index: 3, kind: input, shape index: {}]
  %s4 = inlined_call_operand.vmem [shape: f32[128,128], index: 4, kind: input, shape index: {}]
  %s5 = inlined_call_operand.vmem [shape: f32[128,128], index: 5, kind: input, shape index: {}]
  %s6 = inlined_call_operand.vmem [shape: f32[128,128], index: 6, kind: input, shape index: {}]
  %s7 = inlined_call_operand.vmem [shape: f32[1,128], index: 7, kind: input, shape index: {}]
  %s8 = inlined_call_operand.vmem [shape: f32[128,128], index: 8, kind: input, shape index: {}]
  %s9 = inlined_call_operand.vmem [shape: f32[8,128], index: 9, kind: input, shape index: {}]
  %s10 = inlined_call_operand.vmem [shape: f32[128,128], index: 10, kind: output, shape index: {}]
  %s11 = sld [smem:[#allocation0]]
  $region50: #{wave_san_forward.1} parent=0
    _
  %s13 = ssub.s32 1, %s11
  %s14 = scalar_select 0, %s13, %s11
  // Predicated region
  $region2: #{wave_san_forward.1} parent=0 // pred_check
    _
  $region3: #{wave_san_forward.1} parent=0 // pred_check_branch
    %16 = sbr.rel (0) target = $region5
  $region4: #{wave_san_forward.1} parent=0 // pred_region
    _
  $region5: #{wave_san_forward.1} parent=0 // pred_fallthru
    _
  // Predicated region
  $region6: #{wave_san_forward.1} parent=0 // pred_check
    _
  $region7: #{wave_san_forward.1} parent=0 // pred_check_branch
    %18 = sbr.rel (0) target = $region9
  $region8: #{wave_san_forward.1} parent=0 // pred_region
    _
  $region9: #{wave_san_forward.1} parent=0 // pred_fallthru
    _
  // Predicated region
  $region10: #{wave_san_forward.1} parent=0 // pred_check
    _
  $region11: #{wave_san_forward.1} parent=0 // pred_check_branch
    %20 = sbr.rel (0) target = $region13
  $region12: #{wave_san_forward.1} parent=0 // pred_region
    _
  $region13: #{wave_san_forward.1} parent=0 // pred_fallthru
    _
  // Predicated region
  $region14: #{wave_san_forward.1} parent=0 // pred_check
    _
  $region15: #{wave_san_forward.1} parent=0 // pred_check_branch
    %22 = sbr.rel (0) target = $region17
  $region16: #{wave_san_forward.1} parent=0 // pred_region
    _
  $region17: #{wave_san_forward.1} parent=0 // pred_fallthru
    _
  // Predicated region
  $region18: #{wave_san_forward.1} parent=0 // pred_check
    _
  $region19: #{wave_san_forward.1} parent=0 // pred_check_branch
    %24 = sbr.rel (0) target = $region21
  $region20: #{wave_san_forward.1} parent=0 // pred_region
    _
  $region21: #{wave_san_forward.1} parent=0 // pred_fallthru
    _
  // Predicated region
  $region22: #{wave_san_forward.1} parent=0 // pred_check
    _
  $region23: #{wave_san_forward.1} parent=0 // pred_check_branch
    %26 = sbr.rel (0) target = $region25
  $region24: #{wave_san_forward.1} parent=0 // pred_region
    _
  $region25: #{wave_san_forward.1} parent=0 // pred_fallthru
    _
  // Predicated region
  $region26: #{wave_san_forward.1} parent=0 // pred_check
    _
  $region27: #{wave_san_forward.1} parent=0 // pred_check_branch
    %28 = sbr.rel (0) target = $region29
  $region28: #{wave_san_forward.1} parent=0 // pred_region
    _
  $region29: #{wave_san_forward.1} parent=0 // pred_fallthru
    _
  // Predicated region
  $region30: #{wave_san_forward.1} parent=0 // pred_check
    _
  $region31: #{wave_san_forward.1} parent=0 // pred_check_branch
    %30 = sbr.rel (0) target = $region33
  $region32: #{wave_san_forward.1} parent=0 // pred_region
    _
  $region33: #{wave_san_forward.1} parent=0 // pred_fallthru
    _
  // Predicated region
  $region34: #{wave_san_forward.1} parent=0 // pred_check
    _
  $region35: #{wave_san_forward.1} parent=0 // pred_check_branch
    %32 = sbr.rel (0) target = $region37
  $region36: #{wave_san_forward.1} parent=0 // pred_region
    _
  $region37: #{wave_san_forward.1} parent=0 // pred_fallthru
    _
  // Predicated region
  $region38: #{wave_san_forward.1} parent=0 // pred_check
    _
  $region39: #{wave_san_forward.1} parent=0 // pred_check_branch
    %34 = sbr.rel (0) target = $region41
  $region40: #{wave_san_forward.1} parent=0 // pred_region
    _
  $region41: #{wave_san_forward.1} parent=0 // pred_fallthru
    _
  %v35 = vld [vmem:[%s9] sm:$0xff]
  %v36 = vld [vmem:[%s2] sm:$0xff]
  %v37 = vld [vmem:[%s2 + $0x8] sm:$0xff]
  %v38 = vld [vmem:[%s2 + $0x10] sm:$0xff]
  %v39 = vld [vmem:[%s2 + $0x18] sm:$0xff]
  %v40 = vld [vmem:[%s2 + $0x20] sm:$0xff]
  %v41 = vld [vmem:[%s2 + $0x28] sm:$0xff]
  %v42 = vld [vmem:[%s2 + $0x30] sm:$0xff]
  %v43 = vld [vmem:[%s2 + $0x38] sm:$0xff]
  %v44 = vld [vmem:[%s2 + $0x40] sm:$0xff]
  %v45 = vld [vmem:[%s2 + $0x48] sm:$0xff]
  %v46 = vld [vmem:[%s2 + $0x50] sm:$0xff]
  %v47 = vld [vmem:[%s2 + $0x58] sm:$0xff]
  %v48 = vld [vmem:[%s2 + $0x60] sm:$0xff]
  %v49 = vld [vmem:[%s2 + $0x68] sm:$0xff]
  %v50 = vld [vmem:[%s2 + $0x70] sm:$0xff]
  %v51 = vld [vmem:[%s2 + $0x78] sm:$0xff]
  %v52 = vld [vmem:[%s0] sm:$0xff]
  %v53 = vld [vmem:[%s0 + $0x8] sm:$0xff]
  %v54 = vld [vmem:[%s0 + $0x10] sm:$0xff]
  %v55 = vld [vmem:[%s0 + $0x18] sm:$0xff]
  %v56 = vld [vmem:[%s0 + $0x20] sm:$0xff]
  %v57 = vld [vmem:[%s0 + $0x28] sm:$0xff]
  %v58 = vld [vmem:[%s0 + $0x30] sm:$0xff]
  %v59 = vld [vmem:[%s0 + $0x38] sm:$0xff]
  %v60 = vld [vmem:[%s0 + $0x40] sm:$0xff]
  %v61 = vld [vmem:[%s0 + $0x48] sm:$0xff]
  %v62 = vld [vmem:[%s0 + $0x50] sm:$0xff]
  %v63 = vld [vmem:[%s0 + $0x58] sm:$0xff]
  %v64 = vld [vmem:[%s0 + $0x60] sm:$0xff]
  %v65 = vld [vmem:[%s0 + $0x68] sm:$0xff]
  %v66 = vld [vmem:[%s0 + $0x70] sm:$0xff]
  %v67 = vld [vmem:[%s0 + $0x78] sm:$0xff]
  %v68 = vld [vmem:[%s1] sm:$0xff]
  %v69 = vld [vmem:[%s1 + $0x8] sm:$0xff]
  %v70 = vld [vmem:[%s1 + $0x10] sm:$0xff]
  %v71 = vld [vmem:[%s1 + $0x18] sm:$0xff]
  %v72 = vld [vmem:[%s1 + $0x20] sm:$0xff]
  %v73 = vld [vmem:[%s1 + $0x28] sm:$0xff]
  %v74 = vld [vmem:[%s1 + $0x30] sm:$0xff]
  %v75 = vld [vmem:[%s1 + $0x38] sm:$0xff]
  %v76 = vld [vmem:[%s1 + $0x40] sm:$0xff]
  %v77 = vld [vmem:[%s1 + $0x48] sm:$0xff]
  %v78 = vld [vmem:[%s1 + $0x50] sm:$0xff]
  %v79 = vld [vmem:[%s1 + $0x58] sm:$0xff]
  %v80 = vld [vmem:[%s1 + $0x60] sm:$0xff]
  %v81 = vld [vmem:[%s1 + $0x68] sm:$0xff]
  %v82 = vld [vmem:[%s1 + $0x70] sm:$0xff]
  %v83 = vld [vmem:[%s1 + $0x78] sm:$0xff]
  %v84 = vld [vmem:[%s3] sm:$0xff]
  %v85 = vld [vmem:[%s3 + $0x8] sm:$0xff]
  %v86 = vld [vmem:[%s3 + $0x10] sm:$0xff]
  %v87 = vld [vmem:[%s3 + $0x18] sm:$0xff]
  %v88 = vld [vmem:[%s3 + $0x20] sm:$0xff]
  %v89 = vld [vmem:[%s3 + $0x28] sm:$0xff]
  %v90 = vld [vmem:[%s3 + $0x30] sm:$0xff]
  %v91 = vld [vmem:[%s3 + $0x38] sm:$0xff]
  %v92 = vld [vmem:[%s3 + $0x40] sm:$0xff]
  %v93 = vld [vmem:[%s3 + $0x48] sm:$0xff]
  %v94 = vld [vmem:[%s3 + $0x50] sm:$0xff]
  %v95 = vld [vmem:[%s3 + $0x58] sm:$0xff]
  %v96 = vld [vmem:[%s3 + $0x60] sm:$0xff]
  %v97 = vld [vmem:[%s3 + $0x68] sm:$0xff]
  %v98 = vld [vmem:[%s3 + $0x70] sm:$0xff]
  %v99 = vld [vmem:[%s3 + $0x78] sm:$0xff]
  %v100 = vlaneseq
  %v101 = vshrl.u32 %v100, 7
  %v102 = vsub.s32 0, %v101
  %v103 = vrot.slane %v35, %v102
  %104 = vmatprep.subr.mxu0 0.0
  %105 = vmatpush1.msra.mxu0 %v99
  %106 = vmatprep.subr.mxu0 0.0
  %107 = vmatpush1.msra.mxu0 %v98
  %108 = vmatprep.subr.mxu0 0.0
  %109 = vmatpush1.msra.mxu0 %v97
  %110 = vmatprep.subr.mxu0 0.0
  %111 = vmatpush1.msra.mxu0 %v96
  %112 = vmatprep.subr.mxu0 0.0
  %113 = vmatpush1.msra.mxu0 %v95
  %114 = vmatprep.subr.mxu0 0.0
  %115 = vmatpush1.msra.mxu0 %v94
  %116 = vmatprep.subr.mxu0 0.0
  %117 = vmatpush1.msra.mxu0 %v93
  %118 = vmatprep.subr.mxu0 0.0
  %119 = vmatpush1.msra.mxu0 %v92
  %120 = vmatprep.subr.mxu0 0.0
  %121 = vmatpush1.msra.mxu0 %v91
  %122 = vmatprep.subr.mxu0 0.0
  %123 = vmatpush1.msra.mxu0 %v90
  %124 = vmatprep.subr.mxu0 0.0
  %125 = vmatpush1.msra.mxu0 %v89
  %126 = vmatprep.subr.mxu0 0.0
  %127 = vmatpush1.msra.mxu0 %v88
  %128 = vmatprep.subr.mxu0 0.0
  %129 = vmatpush1.msra.mxu0 %v87
  %130 = vmatprep.subr.mxu0 0.0
  %131 = vmatpush1.msra.mxu0 %v86
  %132 = vmatprep.subr.mxu0 0.0
  %133 = vmatpush1.msra.mxu0 %v85
  %134 = vmatprep.subr.mxu0 0.0
  %135 = vmatpush1.msra.mxu0 %v84
  %136 = vmatprep.subr.mxu0 0.0
  %137 = vmatpush2.msra.mxu0 0.0
  %138 = vmatprep.subr.mxu0 0.0
  %139 = vmatpush2.msra.mxu0 0.0
  %140 = vmatprep.subr.mxu0 0.0
  %141 = vmatpush2.msra.mxu0 0.0
  %142 = vmatprep.subr.mxu0 0.0
  %143 = vmatpush2.msra.mxu0 0.0
  %144 = vmatprep.subr.mxu0 0.0
  %145 = vmatpush2.msra.mxu0 0.0
  %146 = vmatprep.subr.mxu0 0.0
  %147 = vmatpush2.msra.mxu0 0.0
  %148 = vmatprep.subr.mxu0 0.0
  %149 = vmatpush2.msra.mxu0 0.0
  %150 = vmatprep.subr.mxu0 0.0
  %151 = vmatpush2.msra.mxu0 0.0
  %152 = vmatprep.subr.mxu0 0.0
  %153 = vmatpush2.msra.mxu0 0.0
  %154 = vmatprep.subr.mxu0 0.0
  %155 = vmatpush2.msra.mxu0 0.0
  %156 = vmatprep.subr.mxu0 0.0
  %157 = vmatpush2.msra.mxu0 0.0
  %158 = vmatprep.subr.mxu0 0.0
  %159 = vmatpush2.msra.mxu0 0.0
  %160 = vmatprep.subr.mxu0 0.0
  %161 = vmatpush2.msra.mxu0 0.0
  %162 = vmatprep.subr.mxu0 0.0
  %163 = vmatpush2.msra.mxu0 0.0
  %164 = vmatprep.subr.mxu0 0.0
  %165 = vmatpush2.msra.mxu0 0.0
  %166 = vmatprep.subr.mxu0 0.0
  %167 = vmatpush2.msra.mxu0 0.0
  %168 = vmatprep.mubr.f32.mxu0 0.0
  %169 = vmatmul.mubr.f32.gmra.mxu0 %v52
  %v170 = vpop.f32.mrf.mxu0
  %v171 = vadd.f32 %v103, %v170
  %v172 = vpop.f32.mrf.mxu0
  %173 = vmatprep.mubr.f32.mxu0 0.0
  %174 = vmatmul.mubr.f32.gmra.mxu0 %v53
  %v175 = vpop.f32.mrf.mxu0
  %v176 = vadd.f32 %v103, %v175
  %v177 = vpop.f32.mrf.mxu0
  %178 = vmatprep.mubr.f32.mxu0 0.0
  %179 = vmatmul.mubr.f32.gmra.mxu0 %v54
  %v180 = vpop.f32.mrf.mxu0
  %v181 = vadd.f32 %v103, %v180
  %v182 = vpop.f32.mrf.mxu0
  %183 = vmatprep.mubr.f32.mxu0 0.0
  %184 = vmatmul.mubr.f32.gmra.mxu0 %v55
  %v185 = vpop.f32.mrf.mxu0
  %v186 = vadd.f32 %v103, %v185
  %v187 = vpop.f32.mrf.mxu0
  %188 = vmatprep.mubr.f32.mxu0 0.0
  %189 = vmatmul.mubr.f32.gmra.mxu0 %v56
  %v190 = vpop.f32.mrf.mxu0
  %v191 = vadd.f32 %v103, %v190
  %v192 = vpop.f32.mrf.mxu0
  %193 = vmatprep.mubr.f32.mxu0 0.0
  %194 = vmatmul.mubr.f32.gmra.mxu0 %v57
  %v195 = vpop.f32.mrf.mxu0
  %v196 = vadd.f32 %v103, %v195
  %v197 = vpop.f32.mrf.mxu0
  %198 = vmatprep.mubr.f32.mxu0 0.0
  %199 = vmatmul.mubr.f32.gmra.mxu0 %v58
  %v200 = vpop.f32.mrf.mxu0
  %v201 = vadd.f32 %v103, %v200
  %v202 = vpop.f32.mrf.mxu0
  %203 = vmatprep.mubr.f32.mxu0 0.0
  %204 = vmatmul.mubr.f32.gmra.mxu0 %v59
  %v205 = vpop.f32.mrf.mxu0
  %v206 = vadd.f32 %v103, %v205
  %v207 = vpop.f32.mrf.mxu0
  %208 = vmatprep.mubr.f32.mxu0 0.0
  %209 = vmatmul.mubr.f32.gmra.mxu0 %v60
  %v210 = vpop.f32.mrf.mxu0
  %v211 = vadd.f32 %v103, %v210
  %v212 = vpop.f32.mrf.mxu0
  %213 = vmatprep.mubr.f32.mxu0 0.0
  %214 = vmatmul.mubr.f32.gmra.mxu0 %v61
  %v215 = vpop.f32.mrf.mxu0
  %v216 = vadd.f32 %v103, %v215
  %v217 = vpop.f32.mrf.mxu0
  %218 = vmatprep.mubr.f32.mxu0 0.0
  %219 = vmatmul.mubr.f32.gmra.mxu0 %v62
  %v220 = vpop.f32.mrf.mxu0
  %v221 = vadd.f32 %v103, %v220
  %v222 = vpop.f32.mrf.mxu0
  %223 = vmatprep.mubr.f32.mxu0 0.0
  %224 = vmatmul.mubr.f32.gmra.mxu0 %v63
  %v225 = vpop.f32.mrf.mxu0
  %v226 = vadd.f32 %v103, %v225
  %v227 = vpop.f32.mrf.mxu0
  %228 = vmatprep.mubr.f32.mxu0 0.0
  %229 = vmatmul.mubr.f32.gmra.mxu0 %v64
  %v230 = vpop.f32.mrf.mxu0
  %v231 = vadd.f32 %v103, %v230
  %v232 = vpop.f32.mrf.mxu0
  %233 = vmatprep.mubr.f32.mxu0 0.0
  %234 = vmatmul.mubr.f32.gmra.mxu0 %v65
  %v235 = vpop.f32.mrf.mxu0
  %v236 = vadd.f32 %v103, %v235
  %v237 = vpop.f32.mrf.mxu0
  %238 = vmatprep.mubr.f32.mxu0 0.0
  %239 = vmatmul.mubr.f32.gmra.mxu0 %v66
  %v240 = vpop.f32.mrf.mxu0
  %v241 = vadd.f32 %v103, %v240
  %v242 = vpop.f32.mrf.mxu0
  %243 = vmatprep.mubr.f32.mxu0 0.0
  %244 = vmatmul.mubr.f32.gmra.mxu0 %v67
  %v245 = vpop.f32.mrf.mxu0
  %v246 = vadd.f32 %v103, %v245
  %v247 = vpop.f32.mrf.mxu0
  %248 = vdwg.mxu0
  %249 = vxpose.xlu0.b32.start [1/16] %v36, 128
  %250 = vxpose.xlu0.b32.cont [2/16] %v37, 128
  %251 = vxpose.xlu0.b32.cont [3/16] %v38, 128
  %252 = vxpose.xlu0.b32.cont [4/16] %v39, 128
  %253 = vxpose.xlu0.b32.cont [5/16] %v40, 128
  %254 = vxpose.xlu0.b32.cont [6/16] %v41, 128
  %255 = vxpose.xlu0.b32.cont [7/16] %v42, 128
  %256 = vxpose.xlu0.b32.cont [8/16] %v43, 128
  %257 = vxpose.xlu0.b32.cont [9/16] %v44, 128
  %258 = vxpose.xlu0.b32.cont [10/16] %v45, 128
  %259 = vxpose.xlu0.b32.cont [11/16] %v46, 128
  %260 = vxpose.xlu0.b32.cont [12/16] %v47, 128
  %261 = vxpose.xlu0.b32.cont [13/16] %v48, 128
  %262 = vxpose.xlu0.b32.cont [14/16] %v49, 128
  %263 = vxpose.xlu0.b32.cont [15/16] %v50, 128
  %264 = vxpose.xlu0.b32.end [16/16] %v51, 128
  %v265 = vpop.trf.xlu0
  %v266 = vpop.trf.xlu0
  %v267 = vpop.trf.xlu0
  %v268 = vpop.trf.xlu0
  %v269 = vpop.trf.xlu0
  %v270 = vpop.trf.xlu0
  %v271 = vpop.trf.xlu0
  %v272 = vpop.trf.xlu0
  %v273 = vpop.trf.xlu0
  %v274 = vpop.trf.xlu0
  %v275 = vpop.trf.xlu0
  %v276 = vpop.trf.xlu0
  %v277 = vpop.trf.xlu0
  %v278 = vpop.trf.xlu0
  %v279 = vpop.trf.xlu0
  %v280 = vpop.trf.xlu0
  %281 = vmatprep.subr.mxu0 0.0
  %282 = vmatpush1.msra.mxu0 %v246
  %283 = vmatprep.subr.mxu0 0.0
  %284 = vmatpush1.msra.mxu0 %v241
  %285 = vmatprep.subr.mxu0 0.0
  %286 = vmatpush1.msra.mxu0 %v236
  %287 = vmatprep.subr.mxu0 0.0
  %288 = vmatpush1.msra.mxu0 %v231
  %289 = vmatprep.subr.mxu0 0.0
  %290 = vmatpush1.msra.mxu0 %v226
  %291 = vmatprep.subr.mxu0 0.0
  %292 = vmatpush1.msra.mxu0 %v221
  %293 = vmatprep.subr.mxu0 0.0
  %294 = vmatpush1.msra.mxu0 %v216
  %295 = vmatprep.subr.mxu0 0.0
  %296 = vmatpush1.msra.mxu0 %v211
  %297 = vmatprep.subr.mxu0 0.0
  %298 = vmatpush1.msra.mxu0 %v206
  %299 = vmatprep.subr.mxu0 0.0
  %300 = vmatpush1.msra.mxu0 %v201
  %301 = vmatprep.subr.mxu0 0.0
  %302 = vmatpush1.msra.mxu0 %v196
  %303 = vmatprep.subr.mxu0 0.0
  %304 = vmatpush1.msra.mxu0 %v191
  %305 = vmatprep.subr.mxu0 0.0
  %306 = vmatpush1.msra.mxu0 %v186
  %307 = vmatprep.subr.mxu0 0.0
  %308 = vmatpush1.msra.mxu0 %v181
  %309 = vmatprep.subr.mxu0 0.0
  %310 = vmatpush1.msra.mxu0 %v176
  %311 = vmatprep.subr.mxu0 0.0
  %312 = vmatpush1.msra.mxu0 %v171
  %313 = vmatprep.subr.mxu0 0.0
  %314 = vmatpush2.msra.mxu0 0.0
  %315 = vmatprep.subr.mxu0 0.0
  %316 = vmatpush2.msra.mxu0 0.0
  %317 = vmatprep.subr.mxu0 0.0
  %318 = vmatpush2.msra.mxu0 0.0
  %319 = vmatprep.subr.mxu0 0.0
  %320 = vmatpush2.msra.mxu0 0.0
  %321 = vmatprep.subr.mxu0 0.0
  %322 = vmatpush2.msra.mxu0 0.0
  %323 = vmatprep.subr.mxu0 0.0
  %324 = vmatpush2.msra.mxu0 0.0
  %325 = vmatprep.subr.mxu0 0.0
  %326 = vmatpush2.msra.mxu0 0.0
  %327 = vmatprep.subr.mxu0 0.0
  %328 = vmatpush2.msra.mxu0 0.0
  %329 = vmatprep.subr.mxu0 0.0
  %330 = vmatpush2.msra.mxu0 0.0
  %331 = vmatprep.subr.mxu0 0.0
  %332 = vmatpush2.msra.mxu0 0.0
  %333 = vmatprep.subr.mxu0 0.0
  %334 = vmatpush2.msra.mxu0 0.0
  %335 = vmatprep.subr.mxu0 0.0
  %336 = vmatpush2.msra.mxu0 0.0
  %337 = vmatprep.subr.mxu0 0.0
  %338 = vmatpush2.msra.mxu0 0.0
  %339 = vmatprep.subr.mxu0 0.0
  %340 = vmatpush2.msra.mxu0 0.0
  %341 = vmatprep.subr.mxu0 0.0
  %342 = vmatpush2.msra.mxu0 0.0
  %343 = vmatprep.subr.mxu0 0.0
  %344 = vmatpush2.msra.mxu0 0.0
  %345 = vmatprep.mubr.f32.mxu0 0.0
  %346 = vmatmul.mubr.f32.gmra.mxu0 %v265
  %v347 = vpop.f32.mrf.mxu0
  %v348 = vadd.f32 0.0, %v347
  %v349 = vpop.f32.mrf.mxu0
  %350 = vmatprep.mubr.f32.mxu0 0.0
  %351 = vmatmul.mubr.f32.gmra.mxu0 %v266
  %v352 = vpop.f32.mrf.mxu0
  %v353 = vadd.f32 0.0, %v352
  %v354 = vpop.f32.mrf.mxu0
  %355 = vmatprep.mubr.f32.mxu0 0.0
  %356 = vmatmul.mubr.f32.gmra.mxu0 %v267
  %v357 = vpop.f32.mrf.mxu0
  %v358 = vadd.f32 0.0, %v357
  %v359 = vpop.f32.mrf.mxu0
  %360 = vmatprep.mubr.f32.mxu0 0.0
  %361 = vmatmul.mubr.f32.gmra.mxu0 %v268
  %v362 = vpop.f32.mrf.mxu0
  %v363 = vadd.f32 0.0, %v362
  %v364 = vpop.f32.mrf.mxu0
  %365 = vmatprep.mubr.f32.mxu0 0.0
  %366 = vmatmul.mubr.f32.gmra.mxu0 %v269
  %v367 = vpop.f32.mrf.mxu0
  %v368 = vadd.f32 0.0, %v367
  %v369 = vpop.f32.mrf.mxu0
  %370 = vmatprep.mubr.f32.mxu0 0.0
  %371 = vmatmul.mubr.f32.gmra.mxu0 %v270
  %v372 = vpop.f32.mrf.mxu0
  %v373 = vadd.f32 0.0, %v372
  %v374 = vpop.f32.mrf.mxu0
  %375 = vmatprep.mubr.f32.mxu0 0.0
  %376 = vmatmul.mubr.f32.gmra.mxu0 %v271
  %v377 = vpop.f32.mrf.mxu0
  %v378 = vadd.f32 0.0, %v377
  %v379 = vpop.f32.mrf.mxu0
  %380 = vmatprep.mubr.f32.mxu0 0.0
  %381 = vmatmul.mubr.f32.gmra.mxu0 %v272
  %v382 = vpop.f32.mrf.mxu0
  %v383 = vadd.f32 0.0, %v382
  %v384 = vpop.f32.mrf.mxu0
  %385 = vmatprep.mubr.f32.mxu0 0.0
  %386 = vmatmul.mubr.f32.gmra.mxu0 %v273
  %v387 = vpop.f32.mrf.mxu0
  %v388 = vadd.f32 0.0, %v387
  %v389 = vpop.f32.mrf.mxu0
  %390 = vmatprep.mubr.f32.mxu0 0.0
  %391 = vmatmul.mubr.f32.gmra.mxu0 %v274
  %v392 = vpop.f32.mrf.mxu0
  %v393 = vadd.f32 0.0, %v392
  %v394 = vpop.f32.mrf.mxu0
  %395 = vmatprep.mubr.f32.mxu0 0.0
  %396 = vmatmul.mubr.f32.gmra.mxu0 %v275
  %v397 = vpop.f32.mrf.mxu0
  %v398 = vadd.f32 0.0, %v397
  %v399 = vpop.f32.mrf.mxu0
  %400 = vmatprep.mubr.f32.mxu0 0.0
  %401 = vmatmul.mubr.f32.gmra.mxu0 %v276
  %v402 = vpop.f32.mrf.mxu0
  %v403 = vadd.f32 0.0, %v402
  %v404 = vpop.f32.mrf.mxu0
  %405 = vmatprep.mubr.f32.mxu0 0.0
  %406 = vmatmul.mubr.f32.gmra.mxu0 %v277
  %v407 = vpop.f32.mrf.mxu0
  %v408 = vadd.f32 0.0, %v407
  %v409 = vpop.f32.mrf.mxu0
  %410 = vmatprep.mubr.f32.mxu0 0.0
  %411 = vmatmul.mubr.f32.gmra.mxu0 %v278
  %v412 = vpop.f32.mrf.mxu0
  %v413 = vadd.f32 0.0, %v412
  %v414 = vpop.f32.mrf.mxu0
  %415 = vmatprep.mubr.f32.mxu0 0.0
  %416 = vmatmul.mubr.f32.gmra.mxu0 %v279
  %v417 = vpop.f32.mrf.mxu0
  %v418 = vadd.f32 0.0, %v417
  %v419 = vpop.f32.mrf.mxu0
  %420 = vmatprep.mubr.f32.mxu0 0.0
  %421 = vmatmul.mubr.f32.gmra.mxu0 %v280
  %v422 = vpop.f32.mrf.mxu0
  %v423 = vadd.f32 0.0, %v422
  %v424 = vpop.f32.mrf.mxu0
  %425 = vdwg.mxu0
  %v426 = vmul.f32 %v68, %v348
  %v427 = vmul.f32 %v69, %v353
  %v428 = vmul.f32 %v70, %v358
  %v429 = vmul.f32 %v71, %v363
  %v430 = vmul.f32 %v72, %v368
  %v431 = vmul.f32 %v73, %v373
  %v432 = vmul.f32 %v74, %v378
  %v433 = vmul.f32 %v75, %v383
  %v434 = vmul.f32 %v76, %v388
  %v435 = vmul.f32 %v77, %v393
  %v436 = vmul.f32 %v78, %v398
  %v437 = vmul.f32 %v79, %v403
  %v438 = vmul.f32 %v80, %v408
  %v439 = vmul.f32 %v81, %v413
  %v440 = vmul.f32 %v82, %v418
  %v441 = vmul.f32 %v83, %v423
  %442 = vmatprep.subr.mxu0 0.0
  %443 = vmatpush1.msra.mxu0 %v441
  %444 = vmatprep.subr.mxu0 0.0
  %445 = vmatpush1.msra.mxu0 %v440
  %446 = vmatprep.subr.mxu0 0.0
  %447 = vmatpush1.msra.mxu0 %v439
  %448 = vmatprep.subr.mxu0 0.0
  %449 = vmatpush1.msra.mxu0 %v438
  %450 = vmatprep.subr.mxu0 0.0
  %451 = vmatpush1.msra.mxu0 %v437
  %452 = vmatprep.subr.mxu0 0.0
  %453 = vmatpush1.msra.mxu0 %v436
  %454 = vmatprep.subr.mxu0 0.0
  %455 = vmatpush1.msra.mxu0 %v435
  %456 = vmatprep.subr.mxu0 0.0
  %457 = vmatpush1.msra.mxu0 %v434
  %458 = vmatprep.subr.mxu0 0.0
  %459 = vmatpush1.msra.mxu0 %v433
  %460 = vmatprep.subr.mxu0 0.0
  %461 = vmatpush1.msra.mxu0 %v432
  %462 = vmatprep.subr.mxu0 0.0
  %463 = vmatpush1.msra.mxu0 %v431
  %464 = vmatprep.subr.mxu0 0.0
  %465 = vmatpush1.msra.mxu0 %v430
  %466 = vmatprep.subr.mxu0 0.0
  %467 = vmatpush1.msra.mxu0 %v429
  %468 = vmatprep.subr.mxu0 0.0
  %469 = vmatpush1.msra.mxu0 %v428
  %470 = vmatprep.subr.mxu0 0.0
  %471 = vmatpush1.msra.mxu0 %v427
  %472 = vmatprep.subr.mxu0 0.0
  %473 = vmatpush1.msra.mxu0 %v426
  %474 = vmatprep.subr.mxu0 0.0
  %475 = vmatpush2.msra.mxu0 0.0
  %476 = vmatprep.subr.mxu0 0.0
  %477 = vmatpush2.msra.mxu0 0.0
  %478 = vmatprep.subr.mxu0 0.0
  %479 = vmatpush2.msra.mxu0 0.0
  %480 = vmatprep.subr.mxu0 0.0
  %481 = vmatpush2.msra.mxu0 0.0
  %482 = vmatprep.subr.mxu0 0.0
  %483 = vmatpush2.msra.mxu0 0.0
  %484 = vmatprep.subr.mxu0 0.0
  %485 = vmatpush2.msra.mxu0 0.0
  %486 = vmatprep.subr.mxu0 0.0
  %487 = vmatpush2.msra.mxu0 0.0
  %488 = vmatprep.subr.mxu0 0.0
  %489 = vmatpush2.msra.mxu0 0.0
  %490 = vmatprep.subr.mxu0 0.0
  %491 = vmatpush2.msra.mxu0 0.0
  %492 = vmatprep.subr.mxu0 0.0
  %493 = vmatpush2.msra.mxu0 0.0
  %494 = vmatprep.subr.mxu0 0.0
  %495 = vmatpush2.msra.mxu0 0.0
  %496 = vmatprep.subr.mxu0 0.0
  %497 = vmatpush2.msra.mxu0 0.0
  %498 = vmatprep.subr.mxu0 0.0
  %499 = vmatpush2.msra.mxu0 0.0
  %500 = vmatprep.subr.mxu0 0.0
  %501 = vmatpush2.msra.mxu0 0.0
  %502 = vmatprep.subr.mxu0 0.0
  %503 = vmatpush2.msra.mxu0 0.0
  %504 = vmatprep.subr.mxu0 0.0
  %505 = vmatpush2.msra.mxu0 0.0
  %506 = vmatprep.mubr.f32.mxu0 0.0
  %507 = vmatmul.mubr.f32.gmra.mxu0 %v36
  %v508 = vpop.f32.mrf.mxu0
  %v509 = vadd.f32 0.0, %v508
  %v510 = vpop.f32.mrf.mxu0
  %511 = vmatprep.mubr.f32.mxu0 0.0
  %512 = vmatmul.mubr.f32.gmra.mxu0 %v37
  %v513 = vpop.f32.mrf.mxu0
  %v514 = vadd.f32 0.0, %v513
  %v515 = vpop.f32.mrf.mxu0
  %516 = vmatprep.mubr.f32.mxu0 0.0
  %517 = vmatmul.mubr.f32.gmra.mxu0 %v38
  %v518 = vpop.f32.mrf.mxu0
  %v519 = vadd.f32 0.0, %v518
  %v520 = vpop.f32.mrf.mxu0
  %521 = vmatprep.mubr.f32.mxu0 0.0
  %522 = vmatmul.mubr.f32.gmra.mxu0 %v39
  %v523 = vpop.f32.mrf.mxu0
  %v524 = vadd.f32 0.0, %v523
  %v525 = vpop.f32.mrf.mxu0
  %526 = vmatprep.mubr.f32.mxu0 0.0
  %527 = vmatmul.mubr.f32.gmra.mxu0 %v40
  %v528 = vpop.f32.mrf.mxu0
  %v529 = vadd.f32 0.0, %v528
  %v530 = vpop.f32.mrf.mxu0
  %531 = vmatprep.mubr.f32.mxu0 0.0
  %532 = vmatmul.mubr.f32.gmra.mxu0 %v41
  %v533 = vpop.f32.mrf.mxu0
  %v534 = vadd.f32 0.0, %v533
  %v535 = vpop.f32.mrf.mxu0
  %536 = vmatprep.mubr.f32.mxu0 0.0
  %537 = vmatmul.mubr.f32.gmra.mxu0 %v42
  %v538 = vpop.f32.mrf.mxu0
  %v539 = vadd.f32 0.0, %v538
  %v540 = vpop.f32.mrf.mxu0
  %541 = vmatprep.mubr.f32.mxu0 0.0
  %542 = vmatmul.mubr.f32.gmra.mxu0 %v43
  %v543 = vpop.f32.mrf.mxu0
  %v544 = vadd.f32 0.0, %v543
  %v545 = vpop.f32.mrf.mxu0
  %546 = vmatprep.mubr.f32.mxu0 0.0
  %547 = vmatmul.mubr.f32.gmra.mxu0 %v44
  %v548 = vpop.f32.mrf.mxu0
  %v549 = vadd.f32 0.0, %v548
  %v550 = vpop.f32.mrf.mxu0
  %551 = vmatprep.mubr.f32.mxu0 0.0
  %552 = vmatmul.mubr.f32.gmra.mxu0 %v45
  %v553 = vpop.f32.mrf.mxu0
  %v554 = vadd.f32 0.0, %v553
  %v555 = vpop.f32.mrf.mxu0
  %556 = vmatprep.mubr.f32.mxu0 0.0
  %557 = vmatmul.mubr.f32.gmra.mxu0 %v46
  %v558 = vpop.f32.mrf.mxu0
  %v559 = vadd.f32 0.0, %v558
  %v560 = vpop.f32.mrf.mxu0
  %561 = vmatprep.mubr.f32.mxu0 0.0
  %562 = vmatmul.mubr.f32.gmra.mxu0 %v47
  %v563 = vpop.f32.mrf.mxu0
  %v564 = vadd.f32 0.0, %v563
  %v565 = vpop.f32.mrf.mxu0
  %566 = vmatprep.mubr.f32.mxu0 0.0
  %567 = vmatmul.mubr.f32.gmra.mxu0 %v48
  %v568 = vpop.f32.mrf.mxu0
  %v569 = vadd.f32 0.0, %v568
  %v570 = vpop.f32.mrf.mxu0
  %571 = vmatprep.mubr.f32.mxu0 0.0
  %572 = vmatmul.mubr.f32.gmra.mxu0 %v49
  %v573 = vpop.f32.mrf.mxu0
  %v574 = vadd.f32 0.0, %v573
  %v575 = vpop.f32.mrf.mxu0
  %576 = vmatprep.mubr.f32.mxu0 0.0
  %577 = vmatmul.mubr.f32.gmra.mxu0 %v50
  %v578 = vpop.f32.mrf.mxu0
  %v579 = vadd.f32 0.0, %v578
  %v580 = vpop.f32.mrf.mxu0
  %581 = vmatprep.mubr.f32.mxu0 0.0
  %582 = vmatmul.mubr.f32.gmra.mxu0 %v51
  %v583 = vpop.f32.mrf.mxu0
  %v584 = vadd.f32 0.0, %v583
  %v585 = vpop.f32.mrf.mxu0
  %586 = vdwg.mxu0
  %v587 = vmax.f32 %v509, 0.0
  %v588 = vmax.f32 %v514, 0.0
  %v589 = vmax.f32 %v519, 0.0
  %v590 = vmax.f32 %v524, 0.0
  %v591 = vmax.f32 %v529, 0.0
  %v592 = vmax.f32 %v534, 0.0
  %v593 = vmax.f32 %v539, 0.0
  %v594 = vmax.f32 %v544, 0.0
  %v595 = vmax.f32 %v549, 0.0
  %v596 = vmax.f32 %v554, 0.0
  %v597 = vmax.f32 %v559, 0.0
  %v598 = vmax.f32 %v564, 0.0
  %v599 = vmax.f32 %v569, 0.0
  %v600 = vmax.f32 %v574, 0.0
  %v601 = vmax.f32 %v579, 0.0
  %v602 = vmax.f32 %v584, 0.0
  %603 = vmatprep.subr.mxu0 0.0
  %604 = vmatpush1.msra.mxu0 %v602
  %605 = vmatprep.subr.mxu0 0.0
  %606 = vmatpush1.msra.mxu0 %v601
  %607 = vmatprep.subr.mxu0 0.0
  %608 = vmatpush1.msra.mxu0 %v600
  %609 = vmatprep.subr.mxu0 0.0
  %610 = vmatpush1.msra.mxu0 %v599
  %611 = vmatprep.subr.mxu0 0.0
  %612 = vmatpush1.msra.mxu0 %v598
  %613 = vmatprep.subr.mxu0 0.0
  %614 = vmatpush1.msra.mxu0 %v597
  %615 = vmatprep.subr.mxu0 0.0
  %616 = vmatpush1.msra.mxu0 %v596
  %617 = vmatprep.subr.mxu0 0.0
  %618 = vmatpush1.msra.mxu0 %v595
  %619 = vmatprep.subr.mxu0 0.0
  %620 = vmatpush1.msra.mxu0 %v594
  %621 = vmatprep.subr.mxu0 0.0
  %622 = vmatpush1.msra.mxu0 %v593
  %623 = vmatprep.subr.mxu0 0.0
  %624 = vmatpush1.msra.mxu0 %v592
  %625 = vmatprep.subr.mxu0 0.0
  %626 = vmatpush1.msra.mxu0 %v591
  %627 = vmatprep.subr.mxu0 0.0
  %628 = vmatpush1.msra.mxu0 %v590
  %629 = vmatprep.subr.mxu0 0.0
  %630 = vmatpush1.msra.mxu0 %v589
  %631 = vmatprep.subr.mxu0 0.0
  %632 = vmatpush1.msra.mxu0 %v588
  %633 = vmatprep.subr.mxu0 0.0
  %634 = vmatpush1.msra.mxu0 %v587
  %635 = vmatprep.subr.mxu0 0.0
  %636 = vmatpush2.msra.mxu0 0.0
  %637 = vmatprep.subr.mxu0 0.0
  %638 = vmatpush2.msra.mxu0 0.0
  %639 = vmatprep.subr.mxu0 0.0
  %640 = vmatpush2.msra.mxu0 0.0
  %641 = vmatprep.subr.mxu0 0.0
  %642 = vmatpush2.msra.mxu0 0.0
  %643 = vmatprep.subr.mxu0 0.0
  %644 = vmatpush2.msra.mxu0 0.0
  %645 = vmatprep.subr.mxu0 0.0
  %646 = vmatpush2.msra.mxu0 0.0
  %647 = vmatprep.subr.mxu0 0.0
  %648 = vmatpush2.msra.mxu0 0.0
  %649 = vmatprep.subr.mxu0 0.0
  %650 = vmatpush2.msra.mxu0 0.0
  %651 = vmatprep.subr.mxu0 0.0
  %652 = vmatpush2.msra.mxu0 0.0
  %653 = vmatprep.subr.mxu0 0.0
  %654 = vmatpush2.msra.mxu0 0.0
  %655 = vmatprep.subr.mxu0 0.0
  %656 = vmatpush2.msra.mxu0 0.0
  %657 = vmatprep.subr.mxu0 0.0
  %658 = vmatpush2.msra.mxu0 0.0
  %659 = vmatprep.subr.mxu0 0.0
  %660 = vmatpush2.msra.mxu0 0.0
  %661 = vmatprep.subr.mxu0 0.0
  %662 = vmatpush2.msra.mxu0 0.0
  %663 = vmatprep.subr.mxu0 0.0
  %664 = vmatpush2.msra.mxu0 0.0
  %665 = vmatprep.subr.mxu0 0.0
  %666 = vmatpush2.msra.mxu0 0.0
  %667 = vmatprep.mubr.f32.mxu0 0.0
  %668 = vmatmul.mubr.f32.gmra.mxu0 %v265
  %v669 = vpop.f32.mrf.mxu0
  %v670 = vadd.f32 0.0, %v669
  %v671 = vpop.f32.mrf.mxu0
  %672 = vmatprep.mubr.f32.mxu0 0.0
  %673 = vmatmul.mubr.f32.gmra.mxu0 %v266
  %v674 = vpop.f32.mrf.mxu0
  %v675 = vadd.f32 0.0, %v674
  %v676 = vpop.f32.mrf.mxu0
  %677 = vmatprep.mubr.f32.mxu0 0.0
  %678 = vmatmul.mubr.f32.gmra.mxu0 %v267
  %v679 = vpop.f32.mrf.mxu0
  %v680 = vadd.f32 0.0, %v679
  %v681 = vpop.f32.mrf.mxu0
  %682 = vmatprep.mubr.f32.mxu0 0.0
  %683 = vmatmul.mubr.f32.gmra.mxu0 %v268
  %v684 = vpop.f32.mrf.mxu0
  %v685 = vadd.f32 0.0, %v684
  %v686 = vpop.f32.mrf.mxu0
  %687 = vmatprep.mubr.f32.mxu0 0.0
  %688 = vmatmul.mubr.f32.gmra.mxu0 %v269
  %v689 = vpop.f32.mrf.mxu0
  %v690 = vadd.f32 0.0, %v689
  %v691 = vpop.f32.mrf.mxu0
  %692 = vmatprep.mubr.f32.mxu0 0.0
  %693 = vmatmul.mubr.f32.gmra.mxu0 %v270
  %v694 = vpop.f32.mrf.mxu0
  %v695 = vadd.f32 0.0, %v694
  %v696 = vpop.f32.mrf.mxu0
  %697 = vmatprep.mubr.f32.mxu0 0.0
  %698 = vmatmul.mubr.f32.gmra.mxu0 %v271
  %v699 = vpop.f32.mrf.mxu0
  %v700 = vadd.f32 0.0, %v699
  %v701 = vpop.f32.mrf.mxu0
  %702 = vmatprep.mubr.f32.mxu0 0.0
  %703 = vmatmul.mubr.f32.gmra.mxu0 %v272
  %v704 = vpop.f32.mrf.mxu0
  %v705 = vadd.f32 0.0, %v704
  %v706 = vpop.f32.mrf.mxu0
  %707 = vmatprep.mubr.f32.mxu0 0.0
  %708 = vmatmul.mubr.f32.gmra.mxu0 %v273
  %v709 = vpop.f32.mrf.mxu0
  %v710 = vadd.f32 0.0, %v709
  %v711 = vpop.f32.mrf.mxu0
  %712 = vmatprep.mubr.f32.mxu0 0.0
  %713 = vmatmul.mubr.f32.gmra.mxu0 %v274
  %v714 = vpop.f32.mrf.mxu0
  %v715 = vadd.f32 0.0, %v714
  %v716 = vpop.f32.mrf.mxu0
  %717 = vmatprep.mubr.f32.mxu0 0.0
  %718 = vmatmul.mubr.f32.gmra.mxu0 %v275
  %v719 = vpop.f32.mrf.mxu0
  %v720 = vadd.f32 0.0, %v719
  %v721 = vpop.f32.mrf.mxu0
  %722 = vmatprep.mubr.f32.mxu0 0.0
  %723 = vmatmul.mubr.f32.gmra.mxu0 %v276
  %v724 = vpop.f32.mrf.mxu0
  %v725 = vadd.f32 0.0, %v724
  %v726 = vpop.f32.mrf.mxu0
  %727 = vmatprep.mubr.f32.mxu0 0.0
  %728 = vmatmul.mubr.f32.gmra.mxu0 %v277
  %v729 = vpop.f32.mrf.mxu0
  %v730 = vadd.f32 0.0, %v729
  %v731 = vpop.f32.mrf.mxu0
  %732 = vmatprep.mubr.f32.mxu0 0.0
  %733 = vmatmul.mubr.f32.gmra.mxu0 %v278
  %v734 = vpop.f32.mrf.mxu0
  %v735 = vadd.f32 0.0, %v734
  %v736 = vpop.f32.mrf.mxu0
  %737 = vmatprep.mubr.f32.mxu0 0.0
  %738 = vmatmul.mubr.f32.gmra.mxu0 %v279
  %v739 = vpop.f32.mrf.mxu0
  %v740 = vadd.f32 0.0, %v739
  %v741 = vpop.f32.mrf.mxu0
  %742 = vmatprep.mubr.f32.mxu0 0.0
  %743 = vmatmul.mubr.f32.gmra.mxu0 %v280
  %v744 = vpop.f32.mrf.mxu0
  %v745 = vadd.f32 0.0, %v744
  %v746 = vpop.f32.mrf.mxu0
  %747 = vdwg.mxu0
  %v748 = vmul.f32 %v68, %v670
  %v749 = vmul.f32 %v69, %v675
  %v750 = vmul.f32 %v70, %v680
  %v751 = vmul.f32 %v71, %v685
  %v752 = vmul.f32 %v72, %v690
  %v753 = vmul.f32 %v73, %v695
  %v754 = vmul.f32 %v74, %v700
  %v755 = vmul.f32 %v75, %v705
  %v756 = vmul.f32 %v76, %v710
  %v757 = vmul.f32 %v77, %v715
  %v758 = vmul.f32 %v78, %v720
  %v759 = vmul.f32 %v79, %v725
  %v760 = vmul.f32 %v80, %v730
  %v761 = vmul.f32 %v81, %v735
  %v762 = vmul.f32 %v82, %v740
  %v763 = vmul.f32 %v83, %v745
  %764 = vmatprep.subr.mxu0 0.0
  %765 = vmatpush1.msra.mxu0 %v763
  %766 = vmatprep.subr.mxu0 0.0
  %767 = vmatpush1.msra.mxu0 %v762
  %768 = vmatprep.subr.mxu0 0.0
  %769 = vmatpush1.msra.mxu0 %v761
  %770 = vmatprep.subr.mxu0 0.0
  %771 = vmatpush1.msra.mxu0 %v760
  %772 = vmatprep.subr.mxu0 0.0
  %773 = vmatpush1.msra.mxu0 %v759
  %774 = vmatprep.subr.mxu0 0.0
  %775 = vmatpush1.msra.mxu0 %v758
  %776 = vmatprep.subr.mxu0 0.0
  %777 = vmatpush1.msra.mxu0 %v757
  %778 = vmatprep.subr.mxu0 0.0
  %779 = vmatpush1.msra.mxu0 %v756
  %780 = vmatprep.subr.mxu0 0.0
  %781 = vmatpush1.msra.mxu0 %v755
  %782 = vmatprep.subr.mxu0 0.0
  %783 = vmatpush1.msra.mxu0 %v754
  %784 = vmatprep.subr.mxu0 0.0
  %785 = vmatpush1.msra.mxu0 %v753
  %786 = vmatprep.subr.mxu0 0.0
  %787 = vmatpush1.msra.mxu0 %v752
  %788 = vmatprep.subr.mxu0 0.0
  %789 = vmatpush1.msra.mxu0 %v751
  %790 = vmatprep.subr.mxu0 0.0
  %791 = vmatpush1.msra.mxu0 %v750
  %792 = vmatprep.subr.mxu0 0.0
  %793 = vmatpush1.msra.mxu0 %v749
  %794 = vmatprep.subr.mxu0 0.0
  %795 = vmatpush1.msra.mxu0 %v748
  %796 = vmatprep.subr.mxu0 0.0
  %797 = vmatpush2.msra.mxu0 0.0
  %798 = vmatprep.subr.mxu0 0.0
  %799 = vmatpush2.msra.mxu0 0.0
  %800 = vmatprep.subr.mxu0 0.0
  %801 = vmatpush2.msra.mxu0 0.0
  %802 = vmatprep.subr.mxu0 0.0
  %803 = vmatpush2.msra.mxu0 0.0
  %804 = vmatprep.subr.mxu0 0.0
  %805 = vmatpush2.msra.mxu0 0.0
  %806 = vmatprep.subr.mxu0 0.0
  %807 = vmatpush2.msra.mxu0 0.0
  %808 = vmatprep.subr.mxu0 0.0
  %809 = vmatpush2.msra.mxu0 0.0
  %810 = vmatprep.subr.mxu0 0.0
  %811 = vmatpush2.msra.mxu0 0.0
  %812 = vmatprep.subr.mxu0 0.0
  %813 = vmatpush2.msra.mxu0 0.0
  %814 = vmatprep.subr.mxu0 0.0
  %815 = vmatpush2.msra.mxu0 0.0
  %816 = vmatprep.subr.mxu0 0.0
  %817 = vmatpush2.msra.mxu0 0.0
  %818 = vmatprep.subr.mxu0 0.0
  %819 = vmatpush2.msra.mxu0 0.0
  %820 = vmatprep.subr.mxu0 0.0
  %821 = vmatpush2.msra.mxu0 0.0
  %822 = vmatprep.subr.mxu0 0.0
  %823 = vmatpush2.msra.mxu0 0.0
  %824 = vmatprep.subr.mxu0 0.0
  %825 = vmatpush2.msra.mxu0 0.0
  %826 = vmatprep.subr.mxu0 0.0
  %827 = vmatpush2.msra.mxu0 0.0
  %828 = vmatprep.mubr.f32.mxu0 0.0
  %829 = vmatmul.mubr.f32.gmra.mxu0 %v36
  %v830 = vpop.f32.mrf.mxu0
  %v831 = vadd.f32 0.0, %v830
  %v832 = vpop.f32.mrf.mxu0
  %833 = vmatprep.mubr.f32.mxu0 0.0
  %834 = vmatmul.mubr.f32.gmra.mxu0 %v37
  %v835 = vpop.f32.mrf.mxu0
  %v836 = vadd.f32 0.0, %v835
  %v837 = vpop.f32.mrf.mxu0
  %838 = vmatprep.mubr.f32.mxu0 0.0
  %839 = vmatmul.mubr.f32.gmra.mxu0 %v38
  %v840 = vpop.f32.mrf.mxu0
  %v841 = vadd.f32 0.0, %v840
  %v842 = vpop.f32.mrf.mxu0
  %843 = vmatprep.mubr.f32.mxu0 0.0
  %844 = vmatmul.mubr.f32.gmra.mxu0 %v39
  %v845 = vpop.f32.mrf.mxu0
  %v846 = vadd.f32 0.0, %v845
  %v847 = vpop.f32.mrf.mxu0
  %848 = vmatprep.mubr.f32.mxu0 0.0
  %849 = vmatmul.mubr.f32.gmra.mxu0 %v40
  %v850 = vpop.f32.mrf.mxu0
  %v851 = vadd.f32 0.0, %v850
  %v852 = vpop.f32.mrf.mxu0
  %853 = vmatprep.mubr.f32.mxu0 0.0
  %854 = vmatmul.mubr.f32.gmra.mxu0 %v41
  %v855 = vpop.f32.mrf.mxu0
  %v856 = vadd.f32 0.0, %v855
  %v857 = vpop.f32.mrf.mxu0
  %858 = vmatprep.mubr.f32.mxu0 0.0
  %859 = vmatmul.mubr.f32.gmra.mxu0 %v42
  %v860 = vpop.f32.mrf.mxu0
  %v861 = vadd.f32 0.0, %v860
  %v862 = vpop.f32.mrf.mxu0
  %863 = vmatprep.mubr.f32.mxu0 0.0
  %864 = vmatmul.mubr.f32.gmra.mxu0 %v43
  %v865 = vpop.f32.mrf.mxu0
  %v866 = vadd.f32 0.0, %v865
  %v867 = vpop.f32.mrf.mxu0
  %868 = vmatprep.mubr.f32.mxu0 0.0
  %869 = vmatmul.mubr.f32.gmra.mxu0 %v44
  %v870 = vpop.f32.mrf.mxu0
  %v871 = vadd.f32 0.0, %v870
  %v872 = vpop.f32.mrf.mxu0
  %873 = vmatprep.mubr.f32.mxu0 0.0
  %874 = vmatmul.mubr.f32.gmra.mxu0 %v45
  %v875 = vpop.f32.mrf.mxu0
  %v876 = vadd.f32 0.0, %v875
  %v877 = vpop.f32.mrf.mxu0
  %878 = vmatprep.mubr.f32.mxu0 0.0
  %879 = vmatmul.mubr.f32.gmra.mxu0 %v46
  %v880 = vpop.f32.mrf.mxu0
  %v881 = vadd.f32 0.0, %v880
  %v882 = vpop.f32.mrf.mxu0
  %883 = vmatprep.mubr.f32.mxu0 0.0
  %884 = vmatmul.mubr.f32.gmra.mxu0 %v47
  %v885 = vpop.f32.mrf.mxu0
  %v886 = vadd.f32 0.0, %v885
  %v887 = vpop.f32.mrf.mxu0
  %888 = vmatprep.mubr.f32.mxu0 0.0
  %889 = vmatmul.mubr.f32.gmra.mxu0 %v48
  %v890 = vpop.f32.mrf.mxu0
  %v891 = vadd.f32 0.0, %v890
  %v892 = vpop.f32.mrf.mxu0
  %893 = vmatprep.mubr.f32.mxu0 0.0
  %894 = vmatmul.mubr.f32.gmra.mxu0 %v49
  %v895 = vpop.f32.mrf.mxu0
  %v896 = vadd.f32 0.0, %v895
  %v897 = vpop.f32.mrf.mxu0
  %898 = vmatprep.mubr.f32.mxu0 0.0
  %899 = vmatmul.mubr.f32.gmra.mxu0 %v50
  %v900 = vpop.f32.mrf.mxu0
  %v901 = vadd.f32 0.0, %v900
  %v902 = vpop.f32.mrf.mxu0
  %903 = vmatprep.mubr.f32.mxu0 0.0
  %904 = vmatmul.mubr.f32.gmra.mxu0 %v51
  %v905 = vpop.f32.mrf.mxu0
  %v906 = vadd.f32 0.0, %v905
  %v907 = vpop.f32.mrf.mxu0
  %908 = vdwg.mxu0
  %v909 = vld [vmem:[%s4] sm:$0xff]
  %v910 = vld [vmem:[%s4 + $0x8] sm:$0xff]
  %v911 = vld [vmem:[%s4 + $0x10] sm:$0xff]
  %v912 = vld [vmem:[%s4 + $0x18] sm:$0xff]
  %v913 = vld [vmem:[%s4 + $0x20] sm:$0xff]
  %v914 = vld [vmem:[%s4 + $0x28] sm:$0xff]
  %v915 = vld [vmem:[%s4 + $0x30] sm:$0xff]
  %v916 = vld [vmem:[%s4 + $0x38] sm:$0xff]
  %v917 = vld [vmem:[%s4 + $0x40] sm:$0xff]
  %v918 = vld [vmem:[%s4 + $0x48] sm:$0xff]
  %v919 = vld [vmem:[%s4 + $0x50] sm:$0xff]
  %v920 = vld [vmem:[%s4 + $0x58] sm:$0xff]
  %v921 = vld [vmem:[%s4 + $0x60] sm:$0xff]
  %v922 = vld [vmem:[%s4 + $0x68] sm:$0xff]
  %v923 = vld [vmem:[%s4 + $0x70] sm:$0xff]
  %v924 = vld [vmem:[%s4 + $0x78] sm:$0xff]
  %v925 = vld [vmem:[%s5] sm:$0xff]
  %v926 = vld [vmem:[%s5 + $0x8] sm:$0xff]
  %v927 = vld [vmem:[%s5 + $0x10] sm:$0xff]
  %v928 = vld [vmem:[%s5 + $0x18] sm:$0xff]
  %v929 = vld [vmem:[%s5 + $0x20] sm:$0xff]
  %v930 = vld [vmem:[%s5 + $0x28] sm:$0xff]
  %v931 = vld [vmem:[%s5 + $0x30] sm:$0xff]
  %v932 = vld [vmem:[%s5 + $0x38] sm:$0xff]
  %v933 = vld [vmem:[%s5 + $0x40] sm:$0xff]
  %v934 = vld [vmem:[%s5 + $0x48] sm:$0xff]
  %v935 = vld [vmem:[%s5 + $0x50] sm:$0xff]
  %v936 = vld [vmem:[%s5 + $0x58] sm:$0xff]
  %v937 = vld [vmem:[%s5 + $0x60] sm:$0xff]
  %v938 = vld [vmem:[%s5 + $0x68] sm:$0xff]
  %v939 = vld [vmem:[%s5 + $0x70] sm:$0xff]
  %v940 = vld [vmem:[%s5 + $0x78] sm:$0xff]
  %v941 = vld [vmem:[%s6] sm:$0xff]
  %v942 = vld [vmem:[%s6 + $0x8] sm:$0xff]
  %v943 = vld [vmem:[%s6 + $0x10] sm:$0xff]
  %v944 = vld [vmem:[%s6 + $0x18] sm:$0xff]
  %v945 = vld [vmem:[%s6 + $0x20] sm:$0xff]
  %v946 = vld [vmem:[%s6 + $0x28] sm:$0xff]
  %v947 = vld [vmem:[%s6 + $0x30] sm:$0xff]
  %v948 = vld [vmem:[%s6 + $0x38] sm:$0xff]
  %v949 = vld [vmem:[%s6 + $0x40] sm:$0xff]
  %v950 = vld [vmem:[%s6 + $0x48] sm:$0xff]
  %v951 = vld [vmem:[%s6 + $0x50] sm:$0xff]
  %v952 = vld [vmem:[%s6 + $0x58] sm:$0xff]
  %v953 = vld [vmem:[%s6 + $0x60] sm:$0xff]
  %v954 = vld [vmem:[%s6 + $0x68] sm:$0xff]
  %v955 = vld [vmem:[%s6 + $0x70] sm:$0xff]
  %v956 = vld [vmem:[%s6 + $0x78] sm:$0xff]
  %v957 = vld [vmem:[%s7] sm:$0x1]
  %v958 = vld [vmem:[%s8] sm:$0xff]
  %v959 = vld [vmem:[%s8 + $0x8] sm:$0xff]
  %v960 = vld [vmem:[%s8 + $0x10] sm:$0xff]
  %v961 = vld [vmem:[%s8 + $0x18] sm:$0xff]
  %v962 = vld [vmem:[%s8 + $0x20] sm:$0xff]
  %v963 = vld [vmem:[%s8 + $0x28] sm:$0xff]
  %v964 = vld [vmem:[%s8 + $0x30] sm:$0xff]
  %v965 = vld [vmem:[%s8 + $0x38] sm:$0xff]
  %v966 = vld [vmem:[%s8 + $0x40] sm:$0xff]
  %v967 = vld [vmem:[%s8 + $0x48] sm:$0xff]
  %v968 = vld [vmem:[%s8 + $0x50] sm:$0xff]
  %v969 = vld [vmem:[%s8 + $0x58] sm:$0xff]
  %v970 = vld [vmem:[%s8 + $0x60] sm:$0xff]
  %v971 = vld [vmem:[%s8 + $0x68] sm:$0xff]
  %v972 = vld [vmem:[%s8 + $0x70] sm:$0xff]
  %v973 = vld [vmem:[%s8 + $0x78] sm:$0xff]
  %v974 = vlaneseq
  %v975 = vshrl.u32 %v974, 7
  %v976 = vsub.s32 1, %v975
  %v977 = vrot.slane %v35, %v976
  %978 = vmatprep.subr.mxu0 0.0
  %979 = vmatpush1.msra.mxu0 %v924
  %980 = vmatprep.subr.mxu0 0.0
  %981 = vmatpush1.msra.mxu0 %v923
  %982 = vmatprep.subr.mxu0 0.0
  %983 = vmatpush1.msra.mxu0 %v922
  %984 = vmatprep.subr.mxu0 0.0
  %985 = vmatpush1.msra.mxu0 %v921
  %986 = vmatprep.subr.mxu0 0.0
  %987 = vmatpush1.msra.mxu0 %v920
  %988 = vmatprep.subr.mxu0 0.0
  %989 = vmatpush1.msra.mxu0 %v919
  %990 = vmatprep.subr.mxu0 0.0
  %991 = vmatpush1.msra.mxu0 %v918
  %992 = vmatprep.subr.mxu0 0.0
  %993 = vmatpush1.msra.mxu0 %v917
  %994 = vmatprep.subr.mxu0 0.0
  %995 = vmatpush1.msra.mxu0 %v916
  %996 = vmatprep.subr.mxu0 0.0
  %997 = vmatpush1.msra.mxu0 %v915
  %998 = vmatprep.subr.mxu0 0.0
  %999 = vmatpush1.msra.mxu0 %v914
  %1000 = vmatprep.subr.mxu0 0.0
  %1001 = vmatpush1.msra.mxu0 %v913
  %1002 = vmatprep.subr.mxu0 0.0
  %1003 = vmatpush1.msra.mxu0 %v912
  %1004 = vmatprep.subr.mxu0 0.0
  %1005 = vmatpush1.msra.mxu0 %v911
  %1006 = vmatprep.subr.mxu0 0.0
  %1007 = vmatpush1.msra.mxu0 %v910
  %1008 = vmatprep.subr.mxu0 0.0
  %1009 = vmatpush1.msra.mxu0 %v909
  %1010 = vmatprep.subr.mxu0 0.0
  %1011 = vmatpush2.msra.mxu0 0.0
  %1012 = vmatprep.subr.mxu0 0.0
  %1013 = vmatpush2.msra.mxu0 0.0
  %1014 = vmatprep.subr.mxu0 0.0
  %1015 = vmatpush2.msra.mxu0 0.0
  %1016 = vmatprep.subr.mxu0 0.0
  %1017 = vmatpush2.msra.mxu0 0.0
  %1018 = vmatprep.subr.mxu0 0.0
  %1019 = vmatpush2.msra.mxu0 0.0
  %1020 = vmatprep.subr.mxu0 0.0
  %1021 = vmatpush2.msra.mxu0 0.0
  %1022 = vmatprep.subr.mxu0 0.0
  %1023 = vmatpush2.msra.mxu0 0.0
  %1024 = vmatprep.subr.mxu0 0.0
  %1025 = vmatpush2.msra.mxu0 0.0
  %1026 = vmatprep.subr.mxu0 0.0
  %1027 = vmatpush2.msra.mxu0 0.0
  %1028 = vmatprep.subr.mxu0 0.0
  %1029 = vmatpush2.msra.mxu0 0.0
  %1030 = vmatprep.subr.mxu0 0.0
  %1031 = vmatpush2.msra.mxu0 0.0
  %1032 = vmatprep.subr.mxu0 0.0
  %1033 = vmatpush2.msra.mxu0 0.0
  %1034 = vmatprep.subr.mxu0 0.0
  %1035 = vmatpush2.msra.mxu0 0.0
  %1036 = vmatprep.subr.mxu0 0.0
  %1037 = vmatpush2.msra.mxu0 0.0
  %1038 = vmatprep.subr.mxu0 0.0
  %1039 = vmatpush2.msra.mxu0 0.0
  %1040 = vmatprep.subr.mxu0 0.0
  %1041 = vmatpush2.msra.mxu0 0.0
  %1042 = vmatprep.mubr.f32.mxu0 0.0
  %1043 = vmatmul.mubr.f32.gmra.mxu0 %v831
  %v1044 = vpop.f32.mrf.mxu0
  %v1045 = vadd.f32 %v977, %v1044
  %v1046 = vpop.f32.mrf.mxu0
  %1047 = vmatprep.mubr.f32.mxu0 0.0
  %1048 = vmatmul.mubr.f32.gmra.mxu0 %v836
  %v1049 = vpop.f32.mrf.mxu0
  %v1050 = vadd.f32 %v977, %v1049
  %v1051 = vpop.f32.mrf.mxu0
  %1052 = vmatprep.mubr.f32.mxu0 0.0
  %1053 = vmatmul.mubr.f32.gmra.mxu0 %v841
  %v1054 = vpop.f32.mrf.mxu0
  %v1055 = vadd.f32 %v977, %v1054
  %v1056 = vpop.f32.mrf.mxu0
  %1057 = vmatprep.mubr.f32.mxu0 0.0
  %1058 = vmatmul.mubr.f32.gmra.mxu0 %v846
  %v1059 = vpop.f32.mrf.mxu0
  %v1060 = vadd.f32 %v977, %v1059
  %v1061 = vpop.f32.mrf.mxu0
  %1062 = vmatprep.mubr.f32.mxu0 0.0
  %1063 = vmatmul.mubr.f32.gmra.mxu0 %v851
  %v1064 = vpop.f32.mrf.mxu0
  %v1065 = vadd.f32 %v977, %v1064
  %v1066 = vpop.f32.mrf.mxu0
  %1067 = vmatprep.mubr.f32.mxu0 0.0
  %1068 = vmatmul.mubr.f32.gmra.mxu0 %v856
  %v1069 = vpop.f32.mrf.mxu0
  %v1070 = vadd.f32 %v977, %v1069
  %v1071 = vpop.f32.mrf.mxu0
  %1072 = vmatprep.mubr.f32.mxu0 0.0
  %1073 = vmatmul.mubr.f32.gmra.mxu0 %v861
  %v1074 = vpop.f32.mrf.mxu0
  %v1075 = vadd.f32 %v977, %v1074
  %v1076 = vpop.f32.mrf.mxu0
  %1077 = vmatprep.mubr.f32.mxu0 0.0
  %1078 = vmatmul.mubr.f32.gmra.mxu0 %v866
  %v1079 = vpop.f32.mrf.mxu0
  %v1080 = vadd.f32 %v977, %v1079
  %v1081 = vpop.f32.mrf.mxu0
  %1082 = vmatprep.mubr.f32.mxu0 0.0
  %1083 = vmatmul.mubr.f32.gmra.mxu0 %v871
  %v1084 = vpop.f32.mrf.mxu0
  %v1085 = vadd.f32 %v977, %v1084
  %v1086 = vpop.f32.mrf.mxu0
  %1087 = vmatprep.mubr.f32.mxu0 0.0
  %1088 = vmatmul.mubr.f32.gmra.mxu0 %v876
  %v1089 = vpop.f32.mrf.mxu0
  %v1090 = vadd.f32 %v977, %v1089
  %v1091 = vpop.f32.mrf.mxu0
  %1092 = vmatprep.mubr.f32.mxu0 0.0
  %1093 = vmatmul.mubr.f32.gmra.mxu0 %v881
  %v1094 = vpop.f32.mrf.mxu0
  %v1095 = vadd.f32 %v977, %v1094
  %v1096 = vpop.f32.mrf.mxu0
  %1097 = vmatprep.mubr.f32.mxu0 0.0
  %1098 = vmatmul.mubr.f32.gmra.mxu0 %v886
  %v1099 = vpop.f32.mrf.mxu0
  %v1100 = vadd.f32 %v977, %v1099
  %v1101 = vpop.f32.mrf.mxu0
  %1102 = vmatprep.mubr.f32.mxu0 0.0
  %1103 = vmatmul.mubr.f32.gmra.mxu0 %v891
  %v1104 = vpop.f32.mrf.mxu0
  %v1105 = vadd.f32 %v977, %v1104
  %v1106 = vpop.f32.mrf.mxu0
  %1107 = vmatprep.mubr.f32.mxu0 0.0
  %1108 = vmatmul.mubr.f32.gmra.mxu0 %v896
  %v1109 = vpop.f32.mrf.mxu0
  %v1110 = vadd.f32 %v977, %v1109
  %v1111 = vpop.f32.mrf.mxu0
  %1112 = vmatprep.mubr.f32.mxu0 0.0
  %1113 = vmatmul.mubr.f32.gmra.mxu0 %v901
  %v1114 = vpop.f32.mrf.mxu0
  %v1115 = vadd.f32 %v977, %v1114
  %v1116 = vpop.f32.mrf.mxu0
  %1117 = vmatprep.mubr.f32.mxu0 0.0
  %1118 = vmatmul.mubr.f32.gmra.mxu0 %v906
  %v1119 = vpop.f32.mrf.mxu0
  %v1120 = vadd.f32 %v977, %v1119
  %v1121 = vpop.f32.mrf.mxu0
  %1122 = vdwg.mxu0
  %v1123 = vmax.f32 %v1045, 0.0
  %v1124 = vmax.f32 %v1050, 0.0
  %v1125 = vmax.f32 %v1055, 0.0
  %v1126 = vmax.f32 %v1060, 0.0
  %v1127 = vmax.f32 %v1065, 0.0
  %v1128 = vmax.f32 %v1070, 0.0
  %v1129 = vmax.f32 %v1075, 0.0
  %v1130 = vmax.f32 %v1080, 0.0
  %v1131 = vmax.f32 %v1085, 0.0
  %v1132 = vmax.f32 %v1090, 0.0
  %v1133 = vmax.f32 %v1095, 0.0
  %v1134 = vmax.f32 %v1100, 0.0
  %v1135 = vmax.f32 %v1105, 0.0
  %v1136 = vmax.f32 %v1110, 0.0
  %v1137 = vmax.f32 %v1115, 0.0
  %v1138 = vmax.f32 %v1120, 0.0
  %v1139 = vlaneseq
  %v1140 = vshrl.u32 %v1139, 7
  %v1141 = vsub.s32 2, %v1140
  %v1142 = vrot.slane %v35, %v1141
  %1143 = vmatprep.subr.mxu0 0.0
  %1144 = vmatpush1.msra.mxu0 %v940
  %1145 = vmatprep.subr.mxu0 0.0
  %1146 = vmatpush1.msra.mxu0 %v939
  %1147 = vmatprep.subr.mxu0 0.0
  %1148 = vmatpush1.msra.mxu0 %v938
  %1149 = vmatprep.subr.mxu0 0.0
  %1150 = vmatpush1.msra.mxu0 %v937
  %1151 = vmatprep.subr.mxu0 0.0
  %1152 = vmatpush1.msra.mxu0 %v936
  %1153 = vmatprep.subr.mxu0 0.0
  %1154 = vmatpush1.msra.mxu0 %v935
  %1155 = vmatprep.subr.mxu0 0.0
  %1156 = vmatpush1.msra.mxu0 %v934
  %1157 = vmatprep.subr.mxu0 0.0
  %1158 = vmatpush1.msra.mxu0 %v933
  %1159 = vmatprep.subr.mxu0 0.0
  %1160 = vmatpush1.msra.mxu0 %v932
  %1161 = vmatprep.subr.mxu0 0.0
  %1162 = vmatpush1.msra.mxu0 %v931
  %1163 = vmatprep.subr.mxu0 0.0
  %1164 = vmatpush1.msra.mxu0 %v930
  %1165 = vmatprep.subr.mxu0 0.0
  %1166 = vmatpush1.msra.mxu0 %v929
  %1167 = vmatprep.subr.mxu0 0.0
  %1168 = vmatpush1.msra.mxu0 %v928
  %1169 = vmatprep.subr.mxu0 0.0
  %1170 = vmatpush1.msra.mxu0 %v927
  %1171 = vmatprep.subr.mxu0 0.0
  %1172 = vmatpush1.msra.mxu0 %v926
  %1173 = vmatprep.subr.mxu0 0.0
  %1174 = vmatpush1.msra.mxu0 %v925
  %1175 = vmatprep.subr.mxu0 0.0
  %1176 = vmatpush2.msra.mxu0 0.0
  %1177 = vmatprep.subr.mxu0 0.0
  %1178 = vmatpush2.msra.mxu0 0.0
  %1179 = vmatprep.subr.mxu0 0.0
  %1180 = vmatpush2.msra.mxu0 0.0
  %1181 = vmatprep.subr.mxu0 0.0
  %1182 = vmatpush2.msra.mxu0 0.0
  %1183 = vmatprep.subr.mxu0 0.0
  %1184 = vmatpush2.msra.mxu0 0.0
  %1185 = vmatprep.subr.mxu0 0.0
  %1186 = vmatpush2.msra.mxu0 0.0
  %1187 = vmatprep.subr.mxu0 0.0
  %1188 = vmatpush2.msra.mxu0 0.0
  %1189 = vmatprep.subr.mxu0 0.0
  %1190 = vmatpush2.msra.mxu0 0.0
  %1191 = vmatprep.subr.mxu0 0.0
  %1192 = vmatpush2.msra.mxu0 0.0
  %1193 = vmatprep.subr.mxu0 0.0
  %1194 = vmatpush2.msra.mxu0 0.0
  %1195 = vmatprep.subr.mxu0 0.0
  %1196 = vmatpush2.msra.mxu0 0.0
  %1197 = vmatprep.subr.mxu0 0.0
  %1198 = vmatpush2.msra.mxu0 0.0
  %1199 = vmatprep.subr.mxu0 0.0
  %1200 = vmatpush2.msra.mxu0 0.0
  %1201 = vmatprep.subr.mxu0 0.0
  %1202 = vmatpush2.msra.mxu0 0.0
  %1203 = vmatprep.subr.mxu0 0.0
  %1204 = vmatpush2.msra.mxu0 0.0
  %1205 = vmatprep.subr.mxu0 0.0
  %1206 = vmatpush2.msra.mxu0 0.0
  %1207 = vmatprep.mubr.f32.mxu0 0.0
  %1208 = vmatmul.mubr.f32.gmra.mxu0 %v1123
  %v1209 = vpop.f32.mrf.mxu0
  %v1210 = vadd.f32 %v1142, %v1209
  %v1211 = vpop.f32.mrf.mxu0
  %1212 = vmatprep.mubr.f32.mxu0 0.0
  %1213 = vmatmul.mubr.f32.gmra.mxu0 %v1124
  %v1214 = vpop.f32.mrf.mxu0
  %v1215 = vadd.f32 %v1142, %v1214
  %v1216 = vpop.f32.mrf.mxu0
  %1217 = vmatprep.mubr.f32.mxu0 0.0
  %1218 = vmatmul.mubr.f32.gmra.mxu0 %v1125
  %v1219 = vpop.f32.mrf.mxu0
  %v1220 = vadd.f32 %v1142, %v1219
  %v1221 = vpop.f32.mrf.mxu0
  %1222 = vmatprep.mubr.f32.mxu0 0.0
  %1223 = vmatmul.mubr.f32.gmra.mxu0 %v1126
  %v1224 = vpop.f32.mrf.mxu0
  %v1225 = vadd.f32 %v1142, %v1224
  %v1226 = vpop.f32.mrf.mxu0
  %1227 = vmatprep.mubr.f32.mxu0 0.0
  %1228 = vmatmul.mubr.f32.gmra.mxu0 %v1127
  %v1229 = vpop.f32.mrf.mxu0
  %v1230 = vadd.f32 %v1142, %v1229
  %v1231 = vpop.f32.mrf.mxu0
  %1232 = vmatprep.mubr.f32.mxu0 0.0
  %1233 = vmatmul.mubr.f32.gmra.mxu0 %v1128
  %v1234 = vpop.f32.mrf.mxu0
  %v1235 = vadd.f32 %v1142, %v1234
  %v1236 = vpop.f32.mrf.mxu0
  %1237 = vmatprep.mubr.f32.mxu0 0.0
  %1238 = vmatmul.mubr.f32.gmra.mxu0 %v1129
  %v1239 = vpop.f32.mrf.mxu0
  %v1240 = vadd.f32 %v1142, %v1239
  %v1241 = vpop.f32.mrf.mxu0
  %1242 = vmatprep.mubr.f32.mxu0 0.0
  %1243 = vmatmul.mubr.f32.gmra.mxu0 %v1130
  %v1244 = vpop.f32.mrf.mxu0
  %v1245 = vadd.f32 %v1142, %v1244
  %v1246 = vpop.f32.mrf.mxu0
  %1247 = vmatprep.mubr.f32.mxu0 0.0
  %1248 = vmatmul.mubr.f32.gmra.mxu0 %v1131
  %v1249 = vpop.f32.mrf.mxu0
  %v1250 = vadd.f32 %v1142, %v1249
  %v1251 = vpop.f32.mrf.mxu0
  %1252 = vmatprep.mubr.f32.mxu0 0.0
  %1253 = vmatmul.mubr.f32.gmra.mxu0 %v1132
  %v1254 = vpop.f32.mrf.mxu0
  %v1255 = vadd.f32 %v1142, %v1254
  %v1256 = vpop.f32.mrf.mxu0
  %1257 = vmatprep.mubr.f32.mxu0 0.0
  %1258 = vmatmul.mubr.f32.gmra.mxu0 %v1133
  %v1259 = vpop.f32.mrf.mxu0
  %v1260 = vadd.f32 %v1142, %v1259
  %v1261 = vpop.f32.mrf.mxu0
  %1262 = vmatprep.mubr.f32.mxu0 0.0
  %1263 = vmatmul.mubr.f32.gmra.mxu0 %v1134
  %v1264 = vpop.f32.mrf.mxu0
  %v1265 = vadd.f32 %v1142, %v1264
  %v1266 = vpop.f32.mrf.mxu0
  %1267 = vmatprep.mubr.f32.mxu0 0.0
  %1268 = vmatmul.mubr.f32.gmra.mxu0 %v1135
  %v1269 = vpop.f32.mrf.mxu0
  %v1270 = vadd.f32 %v1142, %v1269
  %v1271 = vpop.f32.mrf.mxu0
  %1272 = vmatprep.mubr.f32.mxu0 0.0
  %1273 = vmatmul.mubr.f32.gmra.mxu0 %v1136
  %v1274 = vpop.f32.mrf.mxu0
  %v1275 = vadd.f32 %v1142, %v1274
  %v1276 = vpop.f32.mrf.mxu0
  %1277 = vmatprep.mubr.f32.mxu0 0.0
  %1278 = vmatmul.mubr.f32.gmra.mxu0 %v1137
  %v1279 = vpop.f32.mrf.mxu0
  %v1280 = vadd.f32 %v1142, %v1279
  %v1281 = vpop.f32.mrf.mxu0
  %1282 = vmatprep.mubr.f32.mxu0 0.0
  %1283 = vmatmul.mubr.f32.gmra.mxu0 %v1138
  %v1284 = vpop.f32.mrf.mxu0
  %v1285 = vadd.f32 %v1142, %v1284
  %v1286 = vpop.f32.mrf.mxu0
  %1287 = vdwg.mxu0
  %v1288 = vadd.f32 %v52, %v1210
  %v1289 = vadd.f32 %v53, %v1215
  %v1290 = vadd.f32 %v54, %v1220
  %v1291 = vadd.f32 %v55, %v1225
  %v1292 = vadd.f32 %v56, %v1230
  %v1293 = vadd.f32 %v57, %v1235
  %v1294 = vadd.f32 %v58, %v1240
  %v1295 = vadd.f32 %v59, %v1245
  %v1296 = vadd.f32 %v60, %v1250
  %v1297 = vadd.f32 %v61, %v1255
  %v1298 = vadd.f32 %v62, %v1260
  %v1299 = vadd.f32 %v63, %v1265
  %v1300 = vadd.f32 %v64, %v1270
  %v1301 = vadd.f32 %v65, %v1275
  %v1302 = vadd.f32 %v66, %v1280
  %v1303 = vadd.f32 %v67, %v1285
  %v1304 = vlaneseq
  %v1305 = vshrl.u32 %v1304, 7
  %v1306 = vsub.s32 4, %v1305
  %v1307 = vrot.slane %v35, %v1306
  %v1308 = vmul.f32 %v1288, %v1307
  %v1309 = vmul.f32 %v1289, %v1307
  %v1310 = vmul.f32 %v1290, %v1307
  %v1311 = vmul.f32 %v1291, %v1307
  %v1312 = vmul.f32 %v1292, %v1307
  %v1313 = vmul.f32 %v1293, %v1307
  %v1314 = vmul.f32 %v1294, %v1307
  %v1315 = vmul.f32 %v1295, %v1307
  %v1316 = vmul.f32 %v1296, %v1307
  %v1317 = vmul.f32 %v1297, %v1307
  %v1318 = vmul.f32 %v1298, %v1307
  %v1319 = vmul.f32 %v1299, %v1307
  %v1320 = vmul.f32 %v1300, %v1307
  %v1321 = vmul.f32 %v1301, %v1307
  %v1322 = vmul.f32 %v1302, %v1307
  %v1323 = vmul.f32 %v1303, %v1307
  %v1324 = vlaneseq
  %v1325 = vshrl.u32 %v1324, 7
  %v1326 = vsub.s32 5, %v1325
  %v1327 = vrot.slane %v35, %v1326
  %v1328 = vadd.f32 %v1308, %v1327
  %v1329 = vadd.f32 %v1309, %v1327
  %v1330 = vadd.f32 %v1310, %v1327
  %v1331 = vadd.f32 %v1311, %v1327
  %v1332 = vadd.f32 %v1312, %v1327
  %v1333 = vadd.f32 %v1313, %v1327
  %v1334 = vadd.f32 %v1314, %v1327
  %v1335 = vadd.f32 %v1315, %v1327
  %v1336 = vadd.f32 %v1316, %v1327
  %v1337 = vadd.f32 %v1317, %v1327
  %v1338 = vadd.f32 %v1318, %v1327
  %v1339 = vadd.f32 %v1319, %v1327
  %v1340 = vadd.f32 %v1320, %v1327
  %v1341 = vadd.f32 %v1321, %v1327
  %v1342 = vadd.f32 %v1322, %v1327
  %v1343 = vadd.f32 %v1323, %v1327
  %v1345 = vlaneseq
  %v1346 = vshrl.u32 %v1345, 7
  %v1347 = vsub.s32 0, %v1346
  %v1348 = vrot.slane %v957, %v1347
  %1350 = vmatprep.subr.mxu0 0.0
  %1351 = vmatpush1.msra.mxu0 %v956
  %1352 = vmatprep.subr.mxu0 0.0
  %1353 = vmatpush1.msra.mxu0 %v955
  %1354 = vmatprep.subr.mxu0 0.0
  %1355 = vmatpush1.msra.mxu0 %v954
  %1356 = vmatprep.subr.mxu0 0.0
  %1357 = vmatpush1.msra.mxu0 %v953
  %1358 = vmatprep.subr.mxu0 0.0
  %1359 = vmatpush1.msra.mxu0 %v952
  %1360 = vmatprep.subr.mxu0 0.0
  %1361 = vmatpush1.msra.mxu0 %v951
  %1362 = vmatprep.subr.mxu0 0.0
  %1363 = vmatpush1.msra.mxu0 %v950
  %1364 = vmatprep.subr.mxu0 0.0
  %1365 = vmatpush1.msra.mxu0 %v949
  %1366 = vmatprep.subr.mxu0 0.0
  %1367 = vmatpush1.msra.mxu0 %v948
  %1368 = vmatprep.subr.mxu0 0.0
  %1369 = vmatpush1.msra.mxu0 %v947
  %1370 = vmatprep.subr.mxu0 0.0
  %1371 = vmatpush1.msra.mxu0 %v946
  %1372 = vmatprep.subr.mxu0 0.0
  %1373 = vmatpush1.msra.mxu0 %v945
  %1374 = vmatprep.subr.mxu0 0.0
  %1375 = vmatpush1.msra.mxu0 %v944
  %1376 = vmatprep.subr.mxu0 0.0
  %1377 = vmatpush1.msra.mxu0 %v943
  %1378 = vmatprep.subr.mxu0 0.0
  %1379 = vmatpush1.msra.mxu0 %v942
  %1380 = vmatprep.subr.mxu0 0.0
  %1381 = vmatpush1.msra.mxu0 %v941
  %1382 = vmatprep.subr.mxu0 0.0
  %1383 = vmatpush2.msra.mxu0 0.0
  %1384 = vmatprep.subr.mxu0 0.0
  %1385 = vmatpush2.msra.mxu0 0.0
  %1386 = vmatprep.subr.mxu0 0.0
  %1387 = vmatpush2.msra.mxu0 0.0
  %1388 = vmatprep.subr.mxu0 0.0
  %1389 = vmatpush2.msra.mxu0 0.0
  %1390 = vmatprep.subr.mxu0 0.0
  %1391 = vmatpush2.msra.mxu0 0.0
  %1392 = vmatprep.subr.mxu0 0.0
  %1393 = vmatpush2.msra.mxu0 0.0
  %1394 = vmatprep.subr.mxu0 0.0
  %1395 = vmatpush2.msra.mxu0 0.0
  %1396 = vmatprep.subr.mxu0 0.0
  %1397 = vmatpush2.msra.mxu0 0.0
  %1398 = vmatprep.subr.mxu0 0.0
  %1399 = vmatpush2.msra.mxu0 0.0
  %1400 = vmatprep.subr.mxu0 0.0
  %1401 = vmatpush2.msra.mxu0 0.0
  %1402 = vmatprep.subr.mxu0 0.0
  %1403 = vmatpush2.msra.mxu0 0.0
  %1404 = vmatprep.subr.mxu0 0.0
  %1405 = vmatpush2.msra.mxu0 0.0
  %1406 = vmatprep.subr.mxu0 0.0
  %1407 = vmatpush2.msra.mxu0 0.0
  %1408 = vmatprep.subr.mxu0 0.0
  %1409 = vmatpush2.msra.mxu0 0.0
  %1410 = vmatprep.subr.mxu0 0.0
  %1411 = vmatpush2.msra.mxu0 0.0
  %1412 = vmatprep.subr.mxu0 0.0
  %1413 = vmatpush2.msra.mxu0 0.0
  %1414 = vmatprep.mubr.f32.mxu0 0.0
  %1415 = vmatmul.mubr.f32.gmra.mxu0 %v1328
  %v1416 = vpop.f32.mrf.mxu0
  %v1417 = vadd.f32 %v1348, %v1416
  %v1418 = vpop.f32.mrf.mxu0
  %1419 = vmatprep.mubr.f32.mxu0 0.0
  %1420 = vmatmul.mubr.f32.gmra.mxu0 %v1329
  %v1421 = vpop.f32.mrf.mxu0
  %v1422 = vadd.f32 %v1348, %v1421
  %v1423 = vpop.f32.mrf.mxu0
  %1424 = vmatprep.mubr.f32.mxu0 0.0
  %1425 = vmatmul.mubr.f32.gmra.mxu0 %v1330
  %v1426 = vpop.f32.mrf.mxu0
  %v1427 = vadd.f32 %v1348, %v1426
  %v1428 = vpop.f32.mrf.mxu0
  %1429 = vmatprep.mubr.f32.mxu0 0.0
  %1430 = vmatmul.mubr.f32.gmra.mxu0 %v1331
  %v1431 = vpop.f32.mrf.mxu0
  %v1432 = vadd.f32 %v1348, %v1431
  %v1433 = vpop.f32.mrf.mxu0
  %1434 = vmatprep.mubr.f32.mxu0 0.0
  %1435 = vmatmul.mubr.f32.gmra.mxu0 %v1332
  %v1436 = vpop.f32.mrf.mxu0
  %v1437 = vadd.f32 %v1348, %v1436
  %v1438 = vpop.f32.mrf.mxu0
  %1439 = vmatprep.mubr.f32.mxu0 0.0
  %1440 = vmatmul.mubr.f32.gmra.mxu0 %v1333
  %v1441 = vpop.f32.mrf.mxu0
  %v1442 = vadd.f32 %v1348, %v1441
  %v1443 = vpop.f32.mrf.mxu0
  %1444 = vmatprep.mubr.f32.mxu0 0.0
  %1445 = vmatmul.mubr.f32.gmra.mxu0 %v1334
  %v1446 = vpop.f32.mrf.mxu0
  %v1447 = vadd.f32 %v1348, %v1446
  %v1448 = vpop.f32.mrf.mxu0
  %1449 = vmatprep.mubr.f32.mxu0 0.0
  %1450 = vmatmul.mubr.f32.gmra.mxu0 %v1335
  %v1451 = vpop.f32.mrf.mxu0
  %v1452 = vadd.f32 %v1348, %v1451
  %v1453 = vpop.f32.mrf.mxu0
  %1454 = vmatprep.mubr.f32.mxu0 0.0
  %1455 = vmatmul.mubr.f32.gmra.mxu0 %v1336
  %v1456 = vpop.f32.mrf.mxu0
  %v1457 = vadd.f32 %v1348, %v1456
  %v1458 = vpop.f32.mrf.mxu0
  %1459 = vmatprep.mubr.f32.mxu0 0.0
  %1460 = vmatmul.mubr.f32.gmra.mxu0 %v1337
  %v1461 = vpop.f32.mrf.mxu0
  %v1462 = vadd.f32 %v1348, %v1461
  %v1463 = vpop.f32.mrf.mxu0
  %1464 = vmatprep.mubr.f32.mxu0 0.0
  %1465 = vmatmul.mubr.f32.gmra.mxu0 %v1338
  %v1466 = vpop.f32.mrf.mxu0
  %v1467 = vadd.f32 %v1348, %v1466
  %v1468 = vpop.f32.mrf.mxu0
  %1469 = vmatprep.mubr.f32.mxu0 0.0
  %1470 = vmatmul.mubr.f32.gmra.mxu0 %v1339
  %v1471 = vpop.f32.mrf.mxu0
  %v1472 = vadd.f32 %v1348, %v1471
  %v1473 = vpop.f32.mrf.mxu0
  %1474 = vmatprep.mubr.f32.mxu0 0.0
  %1475 = vmatmul.mubr.f32.gmra.mxu0 %v1340
  %v1476 = vpop.f32.mrf.mxu0
  %v1477 = vadd.f32 %v1348, %v1476
  %v1478 = vpop.f32.mrf.mxu0
  %1479 = vmatprep.mubr.f32.mxu0 0.0
  %1480 = vmatmul.mubr.f32.gmra.mxu0 %v1341
  %v1481 = vpop.f32.mrf.mxu0
  %v1482 = vadd.f32 %v1348, %v1481
  %v1483 = vpop.f32.mrf.mxu0
  %1484 = vmatprep.mubr.f32.mxu0 0.0
  %1485 = vmatmul.mubr.f32.gmra.mxu0 %v1342
  %v1486 = vpop.f32.mrf.mxu0
  %v1487 = vadd.f32 %v1348, %v1486
  %v1488 = vpop.f32.mrf.mxu0
  %1489 = vmatprep.mubr.f32.mxu0 0.0
  %1490 = vmatmul.mubr.f32.gmra.mxu0 %v1343
  %v1491 = vpop.f32.mrf.mxu0
  %v1492 = vadd.f32 %v1348, %v1491
  %v1493 = vpop.f32.mrf.mxu0
  %1494 = vdwg.mxu0
  %v1495 = vmax.f32 %v1417, 0.0
  %v1496 = vmax.f32 %v1422, 0.0
  %v1497 = vmax.f32 %v1427, 0.0
  %v1498 = vmax.f32 %v1432, 0.0
  %v1499 = vmax.f32 %v1437, 0.0
  %v1500 = vmax.f32 %v1442, 0.0
  %v1501 = vmax.f32 %v1447, 0.0
  %v1502 = vmax.f32 %v1452, 0.0
  %v1503 = vmax.f32 %v1457, 0.0
  %v1504 = vmax.f32 %v1462, 0.0
  %v1505 = vmax.f32 %v1467, 0.0
  %v1506 = vmax.f32 %v1472, 0.0
  %v1507 = vmax.f32 %v1477, 0.0
  %v1508 = vmax.f32 %v1482, 0.0
  %v1509 = vmax.f32 %v1487, 0.0
  %v1510 = vmax.f32 %v1492, 0.0
  %v1511 = vlaneseq
  %v1512 = vshrl.u32 %v1511, 7
  %v1513 = vsub.s32 3, %v1512
  %v1514 = vrot.slane %v35, %v1513
  %1515 = vmatprep.subr.mxu0 0.0
  %1516 = vmatpush1.msra.mxu0 %v973
  %1517 = vmatprep.subr.mxu0 0.0
  %1518 = vmatpush1.msra.mxu0 %v972
  %1519 = vmatprep.subr.mxu0 0.0
  %1520 = vmatpush1.msra.mxu0 %v971
  %1521 = vmatprep.subr.mxu0 0.0
  %1522 = vmatpush1.msra.mxu0 %v970
  %1523 = vmatprep.subr.mxu0 0.0
  %1524 = vmatpush1.msra.mxu0 %v969
  %1525 = vmatprep.subr.mxu0 0.0
  %1526 = vmatpush1.msra.mxu0 %v968
  %1527 = vmatprep.subr.mxu0 0.0
  %1528 = vmatpush1.msra.mxu0 %v967
  %1529 = vmatprep.subr.mxu0 0.0
  %1530 = vmatpush1.msra.mxu0 %v966
  %1531 = vmatprep.subr.mxu0 0.0
  %1532 = vmatpush1.msra.mxu0 %v965
  %1533 = vmatprep.subr.mxu0 0.0
  %1534 = vmatpush1.msra.mxu0 %v964
  %1535 = vmatprep.subr.mxu0 0.0
  %1536 = vmatpush1.msra.mxu0 %v963
  %1537 = vmatprep.subr.mxu0 0.0
  %1538 = vmatpush1.msra.mxu0 %v962
  %1539 = vmatprep.subr.mxu0 0.0
  %1540 = vmatpush1.msra.mxu0 %v961
  %1541 = vmatprep.subr.mxu0 0.0
  %1542 = vmatpush1.msra.mxu0 %v960
  %1543 = vmatprep.subr.mxu0 0.0
  %1544 = vmatpush1.msra.mxu0 %v959
  %1545 = vmatprep.subr.mxu0 0.0
  %1546 = vmatpush1.msra.mxu0 %v958
  %1547 = vmatprep.subr.mxu0 0.0
  %1548 = vmatpush2.msra.mxu0 0.0
  %1549 = vmatprep.subr.mxu0 0.0
  %1550 = vmatpush2.msra.mxu0 0.0
  %1551 = vmatprep.subr.mxu0 0.0
  %1552 = vmatpush2.msra.mxu0 0.0
  %1553 = vmatprep.subr.mxu0 0.0
  %1554 = vmatpush2.msra.mxu0 0.0
  %1555 = vmatprep.subr.mxu0 0.0
  %1556 = vmatpush2.msra.mxu0 0.0
  %1557 = vmatprep.subr.mxu0 0.0
  %1558 = vmatpush2.msra.mxu0 0.0
  %1559 = vmatprep.subr.mxu0 0.0
  %1560 = vmatpush2.msra.mxu0 0.0
  %1561 = vmatprep.subr.mxu0 0.0
  %1562 = vmatpush2.msra.mxu0 0.0
  %1563 = vmatprep.subr.mxu0 0.0
  %1564 = vmatpush2.msra.mxu0 0.0
  %1565 = vmatprep.subr.mxu0 0.0
  %1566 = vmatpush2.msra.mxu0 0.0
  %1567 = vmatprep.subr.mxu0 0.0
  %1568 = vmatpush2.msra.mxu0 0.0
  %1569 = vmatprep.subr.mxu0 0.0
  %1570 = vmatpush2.msra.mxu0 0.0
  %1571 = vmatprep.subr.mxu0 0.0
  %1572 = vmatpush2.msra.mxu0 0.0
  %1573 = vmatprep.subr.mxu0 0.0
  %1574 = vmatpush2.msra.mxu0 0.0
  %1575 = vmatprep.subr.mxu0 0.0
  %1576 = vmatpush2.msra.mxu0 0.0
  %1577 = vmatprep.subr.mxu0 0.0
  %1578 = vmatpush2.msra.mxu0 0.0
  %1579 = vmatprep.mubr.f32.mxu0 0.0
  %1580 = vmatmul.mubr.f32.gmra.mxu0 %v1495
  %v1581 = vpop.f32.mrf.mxu0
  %v1582 = vadd.f32 %v1514, %v1581
  %v1583 = vpop.f32.mrf.mxu0
  %1584 = vmatprep.mubr.f32.mxu0 0.0
  %1585 = vmatmul.mubr.f32.gmra.mxu0 %v1496
  %v1586 = vpop.f32.mrf.mxu0
  %v1587 = vadd.f32 %v1514, %v1586
  %v1588 = vpop.f32.mrf.mxu0
  %1589 = vmatprep.mubr.f32.mxu0 0.0
  %1590 = vmatmul.mubr.f32.gmra.mxu0 %v1497
  %v1591 = vpop.f32.mrf.mxu0
  %v1592 = vadd.f32 %v1514, %v1591
  %v1593 = vpop.f32.mrf.mxu0
  %1594 = vmatprep.mubr.f32.mxu0 0.0
  %1595 = vmatmul.mubr.f32.gmra.mxu0 %v1498
  %v1596 = vpop.f32.mrf.mxu0
  %v1597 = vadd.f32 %v1514, %v1596
  %v1598 = vpop.f32.mrf.mxu0
  %1599 = vmatprep.mubr.f32.mxu0 0.0
  %1600 = vmatmul.mubr.f32.gmra.mxu0 %v1499
  %v1601 = vpop.f32.mrf.mxu0
  %v1602 = vadd.f32 %v1514, %v1601
  %v1603 = vpop.f32.mrf.mxu0
  %1604 = vmatprep.mubr.f32.mxu0 0.0
  %1605 = vmatmul.mubr.f32.gmra.mxu0 %v1500
  %v1606 = vpop.f32.mrf.mxu0
  %v1607 = vadd.f32 %v1514, %v1606
  %v1608 = vpop.f32.mrf.mxu0
  %1609 = vmatprep.mubr.f32.mxu0 0.0
  %1610 = vmatmul.mubr.f32.gmra.mxu0 %v1501
  %v1611 = vpop.f32.mrf.mxu0
  %v1612 = vadd.f32 %v1514, %v1611
  %v1613 = vpop.f32.mrf.mxu0
  %1614 = vmatprep.mubr.f32.mxu0 0.0
  %1615 = vmatmul.mubr.f32.gmra.mxu0 %v1502
  %v1616 = vpop.f32.mrf.mxu0
  %v1617 = vadd.f32 %v1514, %v1616
  %v1618 = vpop.f32.mrf.mxu0
  %1619 = vmatprep.mubr.f32.mxu0 0.0
  %1620 = vmatmul.mubr.f32.gmra.mxu0 %v1503
  %v1621 = vpop.f32.mrf.mxu0
  %v1622 = vadd.f32 %v1514, %v1621
  %v1623 = vpop.f32.mrf.mxu0
  %1624 = vmatprep.mubr.f32.mxu0 0.0
  %1625 = vmatmul.mubr.f32.gmra.mxu0 %v1504
  %v1626 = vpop.f32.mrf.mxu0
  %v1627 = vadd.f32 %v1514, %v1626
  %v1628 = vpop.f32.mrf.mxu0
  %1629 = vmatprep.mubr.f32.mxu0 0.0
  %1630 = vmatmul.mubr.f32.gmra.mxu0 %v1505
  %v1631 = vpop.f32.mrf.mxu0
  %v1632 = vadd.f32 %v1514, %v1631
  %v1633 = vpop.f32.mrf.mxu0
  %1634 = vmatprep.mubr.f32.mxu0 0.0
  %1635 = vmatmul.mubr.f32.gmra.mxu0 %v1506
  %v1636 = vpop.f32.mrf.mxu0
  %v1637 = vadd.f32 %v1514, %v1636
  %v1638 = vpop.f32.mrf.mxu0
  %1639 = vmatprep.mubr.f32.mxu0 0.0
  %1640 = vmatmul.mubr.f32.gmra.mxu0 %v1507
  %v1641 = vpop.f32.mrf.mxu0
  %v1642 = vadd.f32 %v1514, %v1641
  %v1643 = vpop.f32.mrf.mxu0
  %1644 = vmatprep.mubr.f32.mxu0 0.0
  %1645 = vmatmul.mubr.f32.gmra.mxu0 %v1508
  %v1646 = vpop.f32.mrf.mxu0
  %v1647 = vadd.f32 %v1514, %v1646
  %v1648 = vpop.f32.mrf.mxu0
  %1649 = vmatprep.mubr.f32.mxu0 0.0
  %1650 = vmatmul.mubr.f32.gmra.mxu0 %v1509
  %v1651 = vpop.f32.mrf.mxu0
  %v1652 = vadd.f32 %v1514, %v1651
  %v1653 = vpop.f32.mrf.mxu0
  %1654 = vmatprep.mubr.f32.mxu0 0.0
  %1655 = vmatmul.mubr.f32.gmra.mxu0 %v1510
  %v1656 = vpop.f32.mrf.mxu0
  %v1657 = vadd.f32 %v1514, %v1656
  %v1658 = vpop.f32.mrf.mxu0
  %1659 = vdwg.mxu0
  %v1660 = vadd.f32 %v1328, %v1582
  %v1661 = vadd.f32 %v1329, %v1587
  %v1662 = vadd.f32 %v1330, %v1592
  %v1663 = vadd.f32 %v1331, %v1597
  %v1664 = vadd.f32 %v1332, %v1602
  %v1665 = vadd.f32 %v1333, %v1607
  %v1666 = vadd.f32 %v1334, %v1612
  %v1667 = vadd.f32 %v1335, %v1617
  %v1668 = vadd.f32 %v1336, %v1622
  %v1669 = vadd.f32 %v1337, %v1627
  %v1670 = vadd.f32 %v1338, %v1632
  %v1671 = vadd.f32 %v1339, %v1637
  %v1672 = vadd.f32 %v1340, %v1642
  %v1673 = vadd.f32 %v1341, %v1647
  %v1674 = vadd.f32 %v1342, %v1652
  %v1675 = vadd.f32 %v1343, %v1657
  %v1676 = vlaneseq
  %v1677 = vshrl.u32 %v1676, 7
  %v1678 = vsub.s32 6, %v1677
  %v1679 = vrot.slane %v35, %v1678
  %v1680 = vmul.f32 %v1660, %v1679
  %v1681 = vmul.f32 %v1661, %v1679
  %v1682 = vmul.f32 %v1662, %v1679
  %v1683 = vmul.f32 %v1663, %v1679
  %v1684 = vmul.f32 %v1664, %v1679
  %v1685 = vmul.f32 %v1665, %v1679
  %v1686 = vmul.f32 %v1666, %v1679
  %v1687 = vmul.f32 %v1667, %v1679
  %v1688 = vmul.f32 %v1668, %v1679
  %v1689 = vmul.f32 %v1669, %v1679
  %v1690 = vmul.f32 %v1670, %v1679
  %v1691 = vmul.f32 %v1671, %v1679
  %v1692 = vmul.f32 %v1672, %v1679
  %v1693 = vmul.f32 %v1673, %v1679
  %v1694 = vmul.f32 %v1674, %v1679
  %v1695 = vmul.f32 %v1675, %v1679
  %v1696 = vlaneseq
  %v1697 = vshrl.u32 %v1696, 7
  %v1698 = vsub.s32 7, %v1697
  %v1699 = vrot.slane %v35, %v1698
  %v1700 = vadd.f32 %v1680, %v1699
  %v1701 = vadd.f32 %v1681, %v1699
  %v1702 = vadd.f32 %v1682, %v1699
  %v1703 = vadd.f32 %v1683, %v1699
  %v1704 = vadd.f32 %v1684, %v1699
  %v1705 = vadd.f32 %v1685, %v1699
  %v1706 = vadd.f32 %v1686, %v1699
  %v1707 = vadd.f32 %v1687, %v1699
  %v1708 = vadd.f32 %v1688, %v1699
  %v1709 = vadd.f32 %v1689, %v1699
  %v1710 = vadd.f32 %v1690, %v1699
  %v1711 = vadd.f32 %v1691, %v1699
  %v1712 = vadd.f32 %v1692, %v1699
  %v1713 = vadd.f32 %v1693, %v1699
  %v1714 = vadd.f32 %v1694, %v1699
  %v1715 = vadd.f32 %v1695, %v1699
  %1716 = vst [vmem:[%s10] sm:$0xff] %v1700
  %1717 = vst [vmem:[%s10 + $0x8] sm:$0xff] %v1701
  %1718 = vst [vmem:[%s10 + $0x10] sm:$0xff] %v1702
  %1719 = vst [vmem:[%s10 + $0x18] sm:$0xff] %v1703
  %1720 = vst [vmem:[%s10 + $0x20] sm:$0xff] %v1704
  %1721 = vst [vmem:[%s10 + $0x28] sm:$0xff] %v1705
  %1722 = vst [vmem:[%s10 + $0x30] sm:$0xff] %v1706
  %1723 = vst [vmem:[%s10 + $0x38] sm:$0xff] %v1707
  %1724 = vst [vmem:[%s10 + $0x40] sm:$0xff] %v1708
  %1725 = vst [vmem:[%s10 + $0x48] sm:$0xff] %v1709
  %1726 = vst [vmem:[%s10 + $0x50] sm:$0xff] %v1710
  %1727 = vst [vmem:[%s10 + $0x58] sm:$0xff] %v1711
  %1728 = vst [vmem:[%s10 + $0x60] sm:$0xff] %v1712
  %1729 = vst [vmem:[%s10 + $0x68] sm:$0xff] %v1713
  %1730 = vst [vmem:[%s10 + $0x70] sm:$0xff] %v1714
  %1731 = vst [vmem:[%s10 + $0x78] sm:$0xff] %v1715
  // Predicated region
  $region42: #{wave_san_forward.1} parent=0 // pred_check
    _
  $region43: #{wave_san_forward.1} parent=0 // pred_check_branch
    %1733 = sbr.rel (0) target = $region45
  $region44: #{wave_san_forward.1} parent=0 // pred_region
    _
  $region45: #{wave_san_forward.1} parent=0 // pred_fallthru
    _
  // Predicated region
  $region46: #{wave_san_forward.1} parent=0 // pred_check
    _
  $region47: #{wave_san_forward.1} parent=0 // pred_check_branch
    %1735 = sbr.rel (0) target = $region49
  $region48: #{wave_san_forward.1} parent=0 // pred_region
    _
  $region49: #{wave_san_forward.1} parent=0 // pred_fallthru
    _

</llo_original>
